<compile_context>
chip_gen: v6e
topology: v6e:2x2x1
jax: 0.10.0
libtpu: 0.0.40
codegen_flags: <defaults>
</compile_context>

<pallas_src>
import jax
import jax.numpy as jnp
from jax import lax
from jax.experimental import pallas as pl
from jax.experimental.pallas import tpu as pltpu

BN_EPS = 1e-5
_VMEM_LIMIT = 48 * 1024 * 1024   # legal on v5e/v6e (128 MiB phys) and v7x (64 MiB phys)
_VMEM_BUDGET = 32 * 1024 * 1024  # conservative per-step working-set target for tiling


def _round_up(x, m):
    return ((x + m - 1) // m) * m


def _choose_tm(m, k_dim, c_pad):
    """Pick the M tile: the largest tile that (a) divides m exactly (no pad
    copy), (b) fits a conservative double-buffered VMEM working set (safe for
    v7x's 64 MiB), and (c) leaves >= 2 grid steps so both v7x TensorCores get
    work on the "parallel" M axis."""
    fixed = 2 * k_dim * c_pad * 2 + 8 * c_pad * 4        # dbl-buffered bf16 weights + scale/shift/stats
    per_row = 2 * (k_dim * 2 + c_pad * 4)                 # dbl-buffered bf16 patch row + output row
    cap = max(8, (_VMEM_BUDGET - fixed) // per_row)
    for tm in (2048, 1024, 512, 256, 128, 64, 32, 16, 8):
        if tm > cap or tm > m:
            continue
        if m % tm == 0 and (m // tm >= 2 or m <= 8):
            return tm
    # Ragged fallback: pad M up to a multiple of tm (padded rows are zero and
    # contribute exact zeros to the BN statistics).
    return int(max(8, min(512, (cap // 8) * 8, _round_up(m, 8))))


# ---------------------------------------------------------------------------
# Kernels
# ---------------------------------------------------------------------------
def _matmul_and_partials(p_ref, w_ref):
    # bf16 x bf16 -> f32 accumulation on the MXU; BN partials from the f32 acc.
    y = jnp.dot(p_ref[...], w_ref[...], preferred_element_type=jnp.float32)
    s = jnp.sum(y, axis=0, keepdims=True)        # (1, C_pad)
    sq = jnp.sum(y * y, axis=0, keepdims=True)   # (1, C_pad)
    return y, s, sq


def conv_stats_kernel(p_ref, w_ref, stats_ref):
    """Pass 1 ("recompute" variant): matmul + per-tile BN partials, no y write."""
    _, s, sq = _matmul_and_partials(p_ref, w_ref)
    stats_ref[0] = jnp.concatenate([s, sq], axis=0)       # only the 2 live rows


def conv_stats_y_kernel(p_ref, w_ref, y_ref, stats_ref):
    """Pass 1 ("materialize" variant): matmul, bf16 y writeback + BN partials."""
    y, s, sq = _matmul_and_partials(p_ref, w_ref)
    y_ref[...] = y.astype(y_ref.dtype)                     # bf16 y halves HBM traffic
    stats_ref[0] = jnp.concatenate([s, sq], axis=0)


def conv_bn_relu_kernel(p_ref, w_ref, scale_ref, shift_ref, o_ref):
    """Pass 2 ("recompute" variant): matmul + folded BN + ReLU, bf16 out."""
    y = jnp.dot(p_ref[...], w_ref[...], preferred_element_type=jnp.float32)
    out = y * scale_ref[...] + shift_ref[...]
    o_ref[...] = jnp.maximum(out, 0.0).astype(o_ref.dtype)


def bn_relu_kernel(y_ref, scale_ref, shift_ref, o_ref):
    """Pass 2 ("materialize" variant): streaming scale/shift + ReLU (VPU)."""
    out = y_ref[...].astype(jnp.float32) * scale_ref[...] + shift_ref[...]
    o_ref[...] = jnp.maximum(out, 0.0).astype(o_ref.dtype)


# ---------------------------------------------------------------------------
# One GroupyConv2 block on NHWC activations (returns bf16 NHWC)
# ---------------------------------------------------------------------------
def gconv2_bn_relu_nhwc(x_nhwc, w, gamma, beta, stride, padding, output_shape,
                        path="auto"):
    n, h, wd, cin = x_nhwc.shape
    cout, cin_w, kh, kw = w.shape
    assert cin_w == cin

    # im2col directly in bf16: (N, OH, OW, Cin*kh*kw), columns in (Cin, kh, kw)
    # order.  TODO(synk): replace with in-kernel 9-shifted matmul (no im2col).
    patches = lax.conv_general_dilated_patches(
        x_nhwc.astype(jnp.bfloat16), (kh, kw), (stride, stride),
        ((padding, padding), (padding, padding)),
        dimension_numbers=("NHWC", "HWIO", "NHWC"))
    _, oh, ow, k_dim = patches.shape
    assert (oh, ow) == tuple(output_shape), (
        f"conv output {(oh, ow)} != requested output_shape {tuple(output_shape)}")
    assert k_dim == cin * kh * kw

    m = n * oh * ow
    c_pad = _round_up(cout, 128)          # lane-dense channel axis
    tm = _choose_tm(m, k_dim, c_pad)
    m_pad = _round_up(m, tm)
    num_tiles = m_pad // tm

    patches_flat = patches.reshape(m, k_dim)
    if m_pad > m:                          # only in the ragged fallback
        patches_flat = jnp.pad(patches_flat, ((0, m_pad - m), (0, 0)))

    # (K, C_pad) bf16 weights; padded channels are zero.
    # TODO(synk): on v7x, single-buffer this constant-index block
    # (pipeline_mode=pl.Buffered(1)); the VMEM budget assumes double buffering.
    w_mat = w.reshape(cout, k_dim).T.astype(jnp.bfloat16)
    w_mat = jnp.pad(w_mat, ((0, 0), (0, c_pad - cout)))

    if path == "auto":
        # Re-reading the bf16 patches in pass 2 is cheaper than a bf16 y
        # write+read whenever K <= 2*c_pad (and those passes are HBM-bound).
        path = "recompute" if k_dim <= 2 * c_pad else "materialize"

    cparams = pltpu.CompilerParams(dimension_semantics=("parallel",),
                                   vmem_limit_bytes=_VMEM_LIMIT)
    patch_spec = pl.BlockSpec((tm, k_dim), lambda i: (i, 0))
    w_spec = pl.BlockSpec((k_dim, c_pad), lambda i: (0, 0))
    vec_spec = pl.BlockSpec((1, c_pad), lambda i: (0, 0))
    row_spec = pl.BlockSpec((tm, c_pad), lambda i: (i, 0))
    stats_spec = pl.BlockSpec((1, 2, c_pad), lambda i: (i, 0, 0))
    stats_shape = jax.ShapeDtypeStruct((num_tiles, 2, c_pad), jnp.float32)

    # ---- Pass 1 ----------------------------------------------------------
    if path == "recompute":
        stats = pl.pallas_call(
            conv_stats_kernel,
            out_shape=stats_shape,
            grid=(num_tiles,),
            in_specs=[patch_spec, w_spec],
            out_specs=stats_spec,
            compiler_params=cparams,
        )(patches_flat, w_mat)
        y_flat = None
    else:
        y_flat, stats = pl.pallas_call(
            conv_stats_y_kernel,
            out_shape=(jax.ShapeDtypeStruct((m_pad, c_pad), jnp.bfloat16),
                       stats_shape),
            grid=(num_tiles,),
            in_specs=[patch_spec, w_spec],
            out_specs=(row_spec, stats_spec),
            compiler_params=cparams,
        )(patches_flat, w_mat)

    # ---- Fold BN (tiny f32 partials; padded rows/channels contribute 0) ---
    total_sum = jnp.sum(stats[:, 0, :], axis=0)                 # (C_pad,)
    total_sq = jnp.sum(stats[:, 1, :], axis=0)                  # (C_pad,)
    mean = total_sum / m                                        # true M, not padded
    # NOTE: E[y^2]-E[y]^2 in f32 (biased, train-mode).  Fine for forward use;
    # switch to a Welford-style per-tile merge if mean >> std channels matter.
    var = jnp.maximum(total_sq / m - mean * mean, 0.0)
    gamma_p = jnp.pad(gamma.astype(jnp.float32), (0, c_pad - cout))
    beta_p = jnp.pad(beta.astype(jnp.float32), (0, c_pad - cout))
    scale_vec = gamma_p * lax.rsqrt(var + BN_EPS)
    shift_vec = beta_p - mean * scale_vec
    scale2 = scale_vec.reshape(1, c_pad)
    shift2 = shift_vec.reshape(1, c_pad)

    # ---- Pass 2 ----------------------------------------------------------
    if path == "recompute":
        out_flat = pl.pallas_call(
            conv_bn_relu_kernel,
            out_shape=jax.ShapeDtypeStruct((m_pad, c_pad), jnp.bfloat16),
            grid=(num_tiles,),
            in_specs=[patch_spec, w_spec, vec_spec, vec_spec],
            out_specs=row_spec,
            compiler_params=cparams,
        )(patches_flat, w_mat, scale2, shift2)
    else:
        out_flat = pl.pallas_call(
            bn_relu_kernel,
            out_shape=jax.ShapeDtypeStruct((m_pad, c_pad), jnp.bfloat16),
            grid=(num_tiles,),
            in_specs=[row_spec, vec_spec, vec_spec],
            out_specs=row_spec,
            compiler_params=cparams,
        )(y_flat, scale2, shift2)

    return out_flat[:m, :cout].reshape(n, oh, ow, cout)


# ---------------------------------------------------------------------------
# Down module:  conv1 = GroupyConv2(in_ch, out_ch, 3, stride=2, pad=1)
#               conv2 = GroupyConv2(out_ch, out_ch, 3, stride=1, pad=1)
# ---------------------------------------------------------------------------
def init_down_params(key, in_ch, out_ch, k=3):
    k1, k2, k3, k4 = jax.random.split(key, 4)
    fan1 = in_ch * k * k
    fan2 = out_ch * k * k
    # b1/b2 kept for parameter parity; a per-channel conv bias is exactly
    # cancelled by train-mode BatchNorm mean subtraction, so the fused kernels
    # intentionally do not consume them.
    return {
        "w1": jax.random.normal(k1, (out_ch, in_ch, k, k), jnp.float32) * (2.0 / fan1) ** 0.5,
        "b1": jax.random.normal(k2, (out_ch,), jnp.float32) * 0.01,
        "g1": jnp.ones((out_ch,), jnp.float32),
        "be1": jnp.zeros((out_ch,), jnp.float32),
        "w2": jax.random.normal(k3, (out_ch, out_ch, k, k), jnp.float32) * (2.0 / fan2) ** 0.5,
        "b2": jax.random.normal(k4, (out_ch,), jnp.float32) * 0.01,
        "g2": jnp.ones((out_ch,), jnp.float32),
        "be2": jnp.zeros((out_ch,), jnp.float32),
    }


def down_forward(params, x_nchw, output_shape):
    # NCHW -> NHWC once; bf16 NHWC between the two fused blocks; back to NCHW
    # (f32) only at the module boundary.
    x = jnp.transpose(x_nchw, (0, 2, 3, 1))
    x = gconv2_bn_relu_nhwc(x, params["w1"], params["g1"], params["be1"],
                            stride=2, padding=1, output_shape=output_shape)
    x = gconv2_bn_relu_nhwc(x, params["w2"], params["g2"], params["be2"],
                            stride=1, padding=1, output_shape=output_shape)
    return jnp.transpose(x, (0, 3, 1, 2)).astype(jnp.float32)


# ---------------------------------------------------------------------------
# Pure-JAX f32 reference (conv + bias + train-mode BN + ReLU) for validation
# ---------------------------------------------------------------------------
def _ref_block(x_nhwc, w, b, gamma, beta, stride, pad):
    w_hwio = jnp.transpose(w, (2, 3, 1, 0))
    y = lax.conv_general_dilated(
        x_nhwc, w_hwio, (stride, stride), ((pad, pad), (pad, pad)),
        dimension_numbers=("NHWC", "HWIO", "NHWC"))
    y = y + b.reshape(1, 1, 1, -1)
    mean = jnp.mean(y, axis=(0, 1, 2), keepdims=True)
    var = jnp.mean((y - mean) ** 2, axis=(0, 1, 2), keepdims=True)
    y = (y - mean) * lax.rsqrt(var + BN_EPS)
    y = y * gamma.reshape(1, 1, 1, -1) + beta.reshape(1, 1, 1, -1)
    return jnp.maximum(y, 0.0)


def down_reference(params, x_nchw):
    x = jnp.transpose(x_nchw, (0, 2, 3, 1))
    x = _ref_block(x, params["w1"], params["b1"], params["g1"], params["be1"], 2, 1)
    x = _ref_block(x, params["w2"], params["b2"], params["g2"], params["be2"], 1, 1)
    return jnp.transpose(x, (0, 3, 1, 2))


if __name__ == "__main__":
    key = jax.random.PRNGKey(0)
    k_x, k_p = jax.random.split(key)

    batch, in_ch, out_ch, spatial = 2, 4, 8, 16
    x = jax.random.normal(k_x, (batch, in_ch, spatial, spatial), jnp.float32)
    output_shape = (spatial // 2, spatial // 2)     # 16 -> 8 after the stride-2 conv

    params = init_down_params(k_p, in_ch, out_ch)

    down = jax.jit(down_forward, static_argnums=(2,))
    y = jax.block_until_ready(down(params, x, output_shape))

    assert y.shape == (batch, out_ch, spatial // 2, spatial // 2), y.shape
    assert bool(jnp.all(y >= 0.0))                  # ReLU post-condition
    assert bool(jnp.all(jnp.isfinite(y)))

    # f32 reference check (bf16 MXU inputs / bf16 activations -> loose tol).
    y_ref = down_reference(params, x)
    max_err = float(jnp.max(jnp.abs(y - y_ref)))
    assert max_err < 1e-1, f"max abs diff vs f32 reference: {max_err}"

    # Cross-check the two statically-selected variants against each other on
    # the first block (exercises both pass-1/pass-2 kernel pairs on hardware).
    x_nhwc = jnp.transpose(x, (0, 2, 3, 1))
    a = gconv2_bn_relu_nhwc(x_nhwc, params["w1"], params["g1"], params["be1"],
                            stride=2, padding=1, output_shape=output_shape,
                            path="recompute")
    b = gconv2_bn_relu_nhwc(x_nhwc, params["w1"], params["g1"], params["be1"],
                            stride=2, padding=1, output_shape=output_shape,
                            path="materialize")
    path_err = float(jnp.max(jnp.abs(a.astype(jnp.float32) - b.astype(jnp.float32))))
    assert path_err < 1e-1, f"recompute vs materialize path mismatch: {path_err}"

    print("KERNEL_OK")
</pallas_src>

<mosaic_0001>
module attributes {stable_mosaic.version = 11 : i64} {
  func.func @conv_stats_kernel(%arg0: i32, %arg1: memref<64x36xbf16, #tpu.memory_space<vmem>>, %arg2: memref<36x128xbf16, #tpu.memory_space<vmem>>, %arg3: memref<1x2x128xf32, #tpu.memory_space<vmem>>) attributes {dimension_semantics = [#tpu.dimension_semantics<parallel>], iteration_bounds = array<i64: 2>, scalar_prefetch = 0 : i64, scratch_operands = 0 : i64, tpu.core_type = #tpu.core_type<tc>, window_params = [{transform_indices = @transform_0, window_bounds = array<i64: 64, 36>}, {pipeline_mode = #tpu.pipeline_mode<synchronous>, transform_indices = @transform_1, window_bounds = array<i64: 36, 128>}, {transform_indices = @transform_2, window_bounds = array<i64: 1, 2, 128>}]} {
    %c0 = arith.constant 0 : index
    %c0_0 = arith.constant 0 : index
    %0 = vector.load %arg1[%c0, %c0_0] : memref<64x36xbf16, #tpu.memory_space<vmem>>, vector<64x36xbf16>
    %c0_1 = arith.constant 0 : index
    %c0_2 = arith.constant 0 : index
    %1 = vector.load %arg2[%c0_1, %c0_2] : memref<36x128xbf16, #tpu.memory_space<vmem>>, vector<36x128xbf16>
    %cst = arith.constant dense<0.000000e+00> : vector<64x128xf32>
    %2 = tpu.matmul %0, %1, %cst {dimension_numbers = #tpu.dot_dimension_numbers<[1], [0], [0], [1], [0, 0, 1, 1], [], []>} : vector<64x36xbf16>, vector<36x128xbf16>, vector<64x128xf32> -> vector<64x128xf32>
    %cst_3 = arith.constant dense<0.000000e+00> : vector<128xf32>
    %3 = vector.multi_reduction <add>, %2, %cst_3 [0] : vector<64x128xf32> to vector<128xf32>
    %4 = vector.shape_cast %3 : vector<128xf32> to vector<1x128xf32>
    %5 = arith.mulf %2, %2 : vector<64x128xf32>
    %cst_4 = arith.constant dense<0.000000e+00> : vector<128xf32>
    %6 = vector.multi_reduction <add>, %5, %cst_4 [0] : vector<64x128xf32> to vector<128xf32>
    %7 = vector.shape_cast %6 : vector<128xf32> to vector<1x128xf32>
    %8 = tpu.concatenate %4, %7 in 0 : vector<1x128xf32>, vector<1x128xf32> -> vector<2x128xf32>
    %c0_5 = arith.constant 0 : index
    %c0_6 = arith.constant 0 : index
    %c0_7 = arith.constant 0 : index
    %9 = vector.load %arg3[%c0_5, %c0_6, %c0_7] : memref<1x2x128xf32, #tpu.memory_space<vmem>>, vector<1x2x128xf32>
    %10 = vector.shape_cast %9 : vector<1x2x128xf32> to vector<2x128xf32>
    %11 = vector.shape_cast %8 : vector<2x128xf32> to vector<1x2x128xf32>
    tpu.vector_store %arg3[%c0_5, %c0_6, %c0_7], %11 {strides = array<i32>} : memref<1x2x128xf32, #tpu.memory_space<vmem>>, vector<1x2x128xf32>,
    return
  }
  func.func @transform_0(%arg0: i32) -> (i32, i32) {
    %c0_i32 = arith.constant 0 : i32
    %c0_i32_0 = arith.constant 0 : i32
    return %arg0, %c0_i32 : i32, i32
  }
  func.func @transform_1(%arg0: i32) -> (i32, i32) {
    %c0_i32 = arith.constant 0 : i32
    %c0_i32_0 = arith.constant 0 : i32
    %c0_i32_1 = arith.constant 0 : i32
    return %c0_i32, %c0_i32_0 : i32, i32
  }
  func.func @transform_2(%arg0: i32) -> (i32, i32, i32) {
    %c0_i32 = arith.constant 0 : i32
    %c0_i32_0 = arith.constant 0 : i32
    %c0_i32_1 = arith.constant 0 : i32
    return %arg0, %c0_i32, %c0_i32_0 : i32, i32, i32
  }
}

module attributes {stable_mosaic.version = 11 : i64} {
  func.func @conv_bn_relu_kernel(%arg0: i32, %arg1: memref<64x36xbf16, #tpu.memory_space<vmem>>, %arg2: memref<36x128xbf16, #tpu.memory_space<vmem>>, %arg3: memref<1x128xf32, #tpu.memory_space<vmem>>, %arg4: memref<1x128xf32, #tpu.memory_space<vmem>>, %arg5: memref<64x128xbf16, #tpu.memory_space<vmem>>) attributes {dimension_semantics = [#tpu.dimension_semantics<parallel>], iteration_bounds = array<i64: 2>, scalar_prefetch = 0 : i64, scratch_operands = 0 : i64, tpu.core_type = #tpu.core_type<tc>, window_params = [{transform_indices = @transform_0, window_bounds = array<i64: 64, 36>}, {pipeline_mode = #tpu.pipeline_mode<synchronous>, transform_indices = @transform_1, window_bounds = array<i64: 36, 128>}, {pipeline_mode = #tpu.pipeline_mode<synchronous>, transform_indices = @transform_2, window_bounds = array<i64: 1, 128>}, {pipeline_mode = #tpu.pipeline_mode<synchronous>, transform_indices = @transform_3, window_bounds = array<i64: 1, 128>}, {transform_indices = @transform_4, window_bounds = array<i64: 64, 128>}]} {
    %c0 = arith.constant 0 : index
    %c0_0 = arith.constant 0 : index
    %0 = vector.load %arg1[%c0, %c0_0] : memref<64x36xbf16, #tpu.memory_space<vmem>>, vector<64x36xbf16>
    %c0_1 = arith.constant 0 : index
    %c0_2 = arith.constant 0 : index
    %1 = vector.load %arg2[%c0_1, %c0_2] : memref<36x128xbf16, #tpu.memory_space<vmem>>, vector<36x128xbf16>
    %cst = arith.constant dense<0.000000e+00> : vector<64x128xf32>
    %2 = tpu.matmul %0, %1, %cst {dimension_numbers = #tpu.dot_dimension_numbers<[1], [0], [0], [1], [0, 0, 1, 1], [], []>} : vector<64x36xbf16>, vector<36x128xbf16>, vector<64x128xf32> -> vector<64x128xf32>
    %c0_3 = arith.constant 0 : index
    %c0_4 = arith.constant 0 : index
    %3 = vector.load %arg3[%c0_3, %c0_4] : memref<1x128xf32, #tpu.memory_space<vmem>>, vector<1x128xf32>
    %4 = vector.broadcast %3 : vector<1x128xf32> to vector<64x128xf32>
    %5 = arith.mulf %2, %4 : vector<64x128xf32>
    %c0_5 = arith.constant 0 : index
    %c0_6 = arith.constant 0 : index
    %6 = vector.load %arg4[%c0_5, %c0_6] : memref<1x128xf32, #tpu.memory_space<vmem>>, vector<1x128xf32>
    %7 = vector.broadcast %6 : vector<1x128xf32> to vector<64x128xf32>
    %8 = arith.addf %5, %7 : vector<64x128xf32>
    %cst_7 = arith.constant 0.000000e+00 : f32
    %9 = vector.broadcast %cst_7 : f32 to vector<64x128xf32>
    %10 = arith.maximumf %8, %9 : vector<64x128xf32>
    %11 = arith.truncf %10 : vector<64x128xf32> to vector<64x128xbf16>
    %c0_8 = arith.constant 0 : index
    %c0_9 = arith.constant 0 : index
    %12 = vector.load %arg5[%c0_8, %c0_9] : memref<64x128xbf16, #tpu.memory_space<vmem>>, vector<64x128xbf16>
    tpu.vector_store %arg5[%c0_8, %c0_9], %11 {strides = array<i32>} : memref<64x128xbf16, #tpu.memory_space<vmem>>, vector<64x128xbf16>,
    return
  }
  func.func @transform_0(%arg0: i32) -> (i32, i32) {
    %c0_i32 = arith.constant 0 : i32
    %c0_i32_0 = arith.constant 0 : i32
    return %arg0, %c0_i32 : i32, i32
  }
  func.func @transform_1(%arg0: i32) -> (i32, i32) {
    %c0_i32 = arith.constant 0 : i32
    %c0_i32_0 = arith.constant 0 : i32
    %c0_i32_1 = arith.constant 0 : i32
    return %c0_i32, %c0_i32_0 : i32, i32
  }
  func.func @transform_2(%arg0: i32) -> (i32, i32) {
    %c0_i32 = arith.constant 0 : i32
    %c0_i32_0 = arith.constant 0 : i32
    %c0_i32_1 = arith.constant 0 : i32
    return %c0_i32, %c0_i32_0 : i32, i32
  }
  func.func @transform_3(%arg0: i32) -> (i32, i32) {
    %c0_i32 = arith.constant 0 : i32
    %c0_i32_0 = arith.constant 0 : i32
    %c0_i32_1 = arith.constant 0 : i32
    return %c0_i32, %c0_i32_0 : i32, i32
  }
  func.func @transform_4(%arg0: i32) -> (i32, i32) {
    %c0_i32 = arith.constant 0 : i32
    %c0_i32_0 = arith.constant 0 : i32
    return %arg0, %c0_i32 : i32, i32
  }
}

module attributes {stable_mosaic.version = 11 : i64} {
  func.func @conv_bn_relu_kernel(%arg0: i32, %arg1: memref<64x72xbf16, #tpu.memory_space<vmem>>, %arg2: memref<72x128xbf16, #tpu.memory_space<vmem>>, %arg3: memref<1x128xf32, #tpu.memory_space<vmem>>, %arg4: memref<1x128xf32, #tpu.memory_space<vmem>>, %arg5: memref<64x128xbf16, #tpu.memory_space<vmem>>) attributes {dimension_semantics = [#tpu.dimension_semantics<parallel>], iteration_bounds = array<i64: 2>, scalar_prefetch = 0 : i64, scratch_operands = 0 : i64, tpu.core_type = #tpu.core_type<tc>, window_params = [{transform_indices = @transform_0, window_bounds = array<i64: 64, 72>}, {pipeline_mode = #tpu.pipeline_mode<synchronous>, transform_indices = @transform_1, window_bounds = array<i64: 72, 128>}, {pipeline_mode = #tpu.pipeline_mode<synchronous>, transform_indices = @transform_2, window_bounds = array<i64: 1, 128>}, {pipeline_mode = #tpu.pipeline_mode<synchronous>, transform_indices = @transform_3, window_bounds = array<i64: 1, 128>}, {transform_indices = @transform_4, window_bounds = array<i64: 64, 128>}]} {
    %c0 = arith.constant 0 : index
    %c0_0 = arith.constant 0 : index
    %0 = vector.load %arg1[%c0, %c0_0] : memref<64x72xbf16, #tpu.memory_space<vmem>>, vector<64x72xbf16>
    %c0_1 = arith.constant 0 : index
    %c0_2 = arith.constant 0 : index
    %1 = vector.load %arg2[%c0_1, %c0_2] : memref<72x128xbf16, #tpu.memory_space<vmem>>, vector<72x128xbf16>
    %cst = arith.constant dense<0.000000e+00> : vector<64x128xf32>
    %2 = tpu.matmul %0, %1, %cst {dimension_numbers = #tpu.dot_dimension_numbers<[1], [0], [0], [1], [0, 0, 1, 1], [], []>} : vector<64x72xbf16>, vector<72x128xbf16>, vector<64x128xf32> -> vector<64x128xf32>
    %c0_3 = arith.constant 0 : index
    %c0_4 = arith.constant 0 : index
    %3 = vector.load %arg3[%c0_3, %c0_4] : memref<1x128xf32, #tpu.memory_space<vmem>>, vector<1x128xf32>
    %4 = vector.broadcast %3 : vector<1x128xf32> to vector<64x128xf32>
    %5 = arith.mulf %2, %4 : vector<64x128xf32>
    %c0_5 = arith.constant 0 : index
    %c0_6 = arith.constant 0 : index
    %6 = vector.load %arg4[%c0_5, %c0_6] : memref<1x128xf32, #tpu.memory_space<vmem>>, vector<1x128xf32>
    %7 = vector.broadcast %6 : vector<1x128xf32> to vector<64x128xf32>
    %8 = arith.addf %5, %7 : vector<64x128xf32>
    %cst_7 = arith.constant 0.000000e+00 : f32
    %9 = vector.broadcast %cst_7 : f32 to vector<64x128xf32>
    %10 = arith.maximumf %8, %9 : vector<64x128xf32>
    %11 = arith.truncf %10 : vector<64x128xf32> to vector<64x128xbf16>
    %c0_8 = arith.constant 0 : index
    %c0_9 = arith.constant 0 : index
    %12 = vector.load %arg5[%c0_8, %c0_9] : memref<64x128xbf16, #tpu.memory_space<vmem>>, vector<64x128xbf16>
    tpu.vector_store %arg5[%c0_8, %c0_9], %11 {strides = array<i32>} : memref<64x128xbf16, #tpu.memory_space<vmem>>, vector<64x128xbf16>,
    return
  }
  func.func @transform_0(%arg0: i32) -> (i32, i32) {
    %c0_i32 = arith.constant 0 : i32
    %c0_i32_0 = arith.constant 0 : i32
    return %arg0, %c0_i32 : i32, i32
  }
  func.func @transform_1(%arg0: i32) -> (i32, i32) {
    %c0_i32 = arith.constant 0 : i32
    %c0_i32_0 = arith.constant 0 : i32
    %c0_i32_1 = arith.constant 0 : i32
    return %c0_i32, %c0_i32_0 : i32, i32
  }
  func.func @transform_2(%arg0: i32) -> (i32, i32) {
    %c0_i32 = arith.constant 0 : i32
    %c0_i32_0 = arith.constant 0 : i32
    %c0_i32_1 = arith.constant 0 : i32
    return %c0_i32, %c0_i32_0 : i32, i32
  }
  func.func @transform_3(%arg0: i32) -> (i32, i32) {
    %c0_i32 = arith.constant 0 : i32
    %c0_i32_0 = arith.constant 0 : i32
    %c0_i32_1 = arith.constant 0 : i32
    return %c0_i32, %c0_i32_0 : i32, i32
  }
  func.func @transform_4(%arg0: i32) -> (i32, i32) {
    %c0_i32 = arith.constant 0 : i32
    %c0_i32_0 = arith.constant 0 : i32
    return %arg0, %c0_i32 : i32, i32
  }
}

module attributes {stable_mosaic.version = 11 : i64} {
  func.func @conv_stats_kernel(%arg0: i32, %arg1: memref<64x72xbf16, #tpu.memory_space<vmem>>, %arg2: memref<72x128xbf16, #tpu.memory_space<vmem>>, %arg3: memref<1x2x128xf32, #tpu.memory_space<vmem>>) attributes {dimension_semantics = [#tpu.dimension_semantics<parallel>], iteration_bounds = array<i64: 2>, scalar_prefetch = 0 : i64, scratch_operands = 0 : i64, tpu.core_type = #tpu.core_type<tc>, window_params = [{transform_indices = @transform_0, window_bounds = array<i64: 64, 72>}, {pipeline_mode = #tpu.pipeline_mode<synchronous>, transform_indices = @transform_1, window_bounds = array<i64: 72, 128>}, {transform_indices = @transform_2, window_bounds = array<i64: 1, 2, 128>}]} {
    %c0 = arith.constant 0 : index
    %c0_0 = arith.constant 0 : index
    %0 = vector.load %arg1[%c0, %c0_0] : memref<64x72xbf16, #tpu.memory_space<vmem>>, vector<64x72xbf16>
    %c0_1 = arith.constant 0 : index
    %c0_2 = arith.constant 0 : index
    %1 = vector.load %arg2[%c0_1, %c0_2] : memref<72x128xbf16, #tpu.memory_space<vmem>>, vector<72x128xbf16>
    %cst = arith.constant dense<0.000000e+00> : vector<64x128xf32>
    %2 = tpu.matmul %0, %1, %cst {dimension_numbers = #tpu.dot_dimension_numbers<[1], [0], [0], [1], [0, 0, 1, 1], [], []>} : vector<64x72xbf16>, vector<72x128xbf16>, vector<64x128xf32> -> vector<64x128xf32>
    %cst_3 = arith.constant dense<0.000000e+00> : vector<128xf32>
    %3 = vector.multi_reduction <add>, %2, %cst_3 [0] : vector<64x128xf32> to vector<128xf32>
    %4 = vector.shape_cast %3 : vector<128xf32> to vector<1x128xf32>
    %5 = arith.mulf %2, %2 : vector<64x128xf32>
    %cst_4 = arith.constant dense<0.000000e+00> : vector<128xf32>
    %6 = vector.multi_reduction <add>, %5, %cst_4 [0] : vector<64x128xf32> to vector<128xf32>
    %7 = vector.shape_cast %6 : vector<128xf32> to vector<1x128xf32>
    %8 = tpu.concatenate %4, %7 in 0 : vector<1x128xf32>, vector<1x128xf32> -> vector<2x128xf32>
    %c0_5 = arith.constant 0 : index
    %c0_6 = arith.constant 0 : index
    %c0_7 = arith.constant 0 : index
    %9 = vector.load %arg3[%c0_5, %c0_6, %c0_7] : memref<1x2x128xf32, #tpu.memory_space<vmem>>, vector<1x2x128xf32>
    %10 = vector.shape_cast %9 : vector<1x2x128xf32> to vector<2x128xf32>
    %11 = vector.shape_cast %8 : vector<2x128xf32> to vector<1x2x128xf32>
    tpu.vector_store %arg3[%c0_5, %c0_6, %c0_7], %11 {strides = array<i32>} : memref<1x2x128xf32, #tpu.memory_space<vmem>>, vector<1x2x128xf32>,
    return
  }
  func.func @transform_0(%arg0: i32) -> (i32, i32) {
    %c0_i32 = arith.constant 0 : i32
    %c0_i32_0 = arith.constant 0 : i32
    return %arg0, %c0_i32 : i32, i32
  }
  func.func @transform_1(%arg0: i32) -> (i32, i32) {
    %c0_i32 = arith.constant 0 : i32
    %c0_i32_0 = arith.constant 0 : i32
    %c0_i32_1 = arith.constant 0 : i32
    return %c0_i32, %c0_i32_0 : i32, i32
  }
  func.func @transform_2(%arg0: i32) -> (i32, i32, i32) {
    %c0_i32 = arith.constant 0 : i32
    %c0_i32_0 = arith.constant 0 : i32
    %c0_i32_1 = arith.constant 0 : i32
    return %arg0, %c0_i32, %c0_i32_0 : i32, i32, i32
  }
}

</mosaic_0001>

<llo_original>
// kernel: down_forward.4
$region0: #{down_forward.4}
  #allocation0 [shape = 'u32[]', space=smem, size = 0x4, offset = 0x4, fixed_abs, tag = 'smem constant byte address 0x4 - core index']
  #allocation1 [shape = 'u32[144,128]{1,0:T(1,128)}', space=vmem, size = 0x12000, scoped, tag = 'internal scratch']
  %s0 = inlined_call_operand.vmem [shape: bf16[128,36], index: 0, kind: input, shape index: {}]
  %s1 = inlined_call_operand.vmem [shape: bf16[36,128], index: 1, kind: input, shape index: {}]
  %s2 = inlined_call_operand.vmem [shape: f32[2,2,128], index: 2, kind: output, shape index: {}]
  %s3 = sld [smem:[#allocation0]]
  $region41: #{down_forward.4} parent=0
    _
  %s5 = ssub.s32 1, %s3
  %s6 = scalar_select 0, %s5, %s3
  loop: start=0, step=1, limit=4
  $region2: #{down_forward.4} parent=0 // loop_pre_header
    _
  $region3: #{down_forward.4} parent=0 // loop_header
    %s8 = sphi 0, %s12
    %p9 = scmp.ge.s32.totalorder %s8, 4
    %s18 = sphi 0, %s20
    %s21 = sphi 0, %s18
    %s22 = sphi 0, %s21
    %s38 = sphi 0, %s22
    %s42 = sphi 0, %s42
    %s44 = sphi 0, %s42
    %s45 = sphi 0, %s44
    %s59 = sphi 0, %s45
    %s65 = sphi 0, %s67
    %s68 = sphi 0, %s65
    %s69 = sphi 0, %s68
    %s85 = sphi 0, %s69
  $region4: #{down_forward.4} parent=0 // loop_header_branch
    %11 = sbr.rel (%p9) target = $region8
  $region5: #{down_forward.4} parent=0 // loop_body
    %s13 = ssub.s32 %s8, 1
    %s14 = ssub.s32 %s8, 2
    %s15 = sadd.s32 %s8, 1
    %s16 = ssub.s32 %s8, %s15
    %p17 = scmp.eq.s32.totalorder %s16, 0
    %s19 = sadd.s32 %s18, 1
    %s20 = scalar_select %p17, %s18, %s19
    %p23 = pneg %p17
    %p24 = scmp.eq.s32.totalorder %s8, 1
    %p25 = por %p23, %p24
    %p26 = scmp.ne.s32.totalorder %s18, %s21
    %p27 = scmp.eq.s32.totalorder %s8, 0
    %p28 = por %p26, %p27
    %p29 = scmp.ne.s32.totalorder %s18, %s21
    %p30 = scmp.eq.s32.totalorder %s13, 1
    %p31 = por %p29, %p30
    %p32 = scmp.ne.s32.totalorder %s21, %s22
    %p33 = scmp.eq.s32.totalorder %s13, 0
    %p34 = por %p32, %p33
    %p35 = scmp.ne.s32.totalorder %s21, %s22
    %p36 = scmp.eq.s32.totalorder %s14, 1
    %p37 = por %p35, %p36
    %p39 = scmp.ne.s32.totalorder %s22, %s38
    %p40 = scmp.eq.s32.totalorder %s14, 0
    %p41 = por %p39, %p40
    %s43 = sadd.s32 %s42, 1
    %p46 = scmp.eq.s32.totalorder %s8, 1
    %p47 = scmp.ne.s32.totalorder %s42, %s44
    %p48 = scmp.eq.s32.totalorder %s8, 0
    %p49 = por %p47, %p48
    %p50 = scmp.ne.s32.totalorder %s42, %s44
    %p51 = scmp.eq.s32.totalorder %s13, 1
    %p52 = por %p50, %p51
    %p53 = scmp.ne.s32.totalorder %s44, %s45
    %p54 = scmp.eq.s32.totalorder %s13, 0
    %p55 = por %p53, %p54
    %p56 = scmp.ne.s32.totalorder %s44, %s45
    %p57 = scmp.eq.s32.totalorder %s14, 1
    %p58 = por %p56, %p57
    %p60 = scmp.ne.s32.totalorder %s45, %s59
    %p61 = scmp.eq.s32.totalorder %s14, 0
    %p62 = por %p60, %p61
    %s63 = ssub.s32 %s8, %s15
    %p64 = scmp.eq.s32.totalorder %s63, 0
    %s66 = sadd.s32 %s65, 1
    %s67 = scalar_select %p64, %s65, %s66
    %p70 = pneg %p64
    %p71 = scmp.eq.s32.totalorder %s8, 1
    %p72 = por %p70, %p71
    %p73 = scmp.ne.s32.totalorder %s65, %s68
    %p74 = scmp.eq.s32.totalorder %s8, 0
    %p75 = por %p73, %p74
    %p76 = scmp.ne.s32.totalorder %s65, %s68
    %p77 = scmp.eq.s32.totalorder %s13, 1
    %p78 = por %p76, %p77
    %p79 = scmp.ne.s32.totalorder %s68, %s69
    %p80 = scmp.eq.s32.totalorder %s13, 0
    %p81 = por %p79, %p80
    %p82 = scmp.ne.s32.totalorder %s68, %s69
    %p83 = scmp.eq.s32.totalorder %s14, 1
    %p84 = por %p82, %p83
    %p86 = scmp.ne.s32.totalorder %s69, %s85
    %p87 = scmp.eq.s32.totalorder %s14, 0
    %p88 = por %p86, %p87
    %p89 = scmp.le.s32.totalorder 1, %s8
    %p90 = scmp.lt.s32.totalorder %s8, 3
    %p91 = pnand %p89, %p90
    %p92 = pneg %p91
    // Predicated region
    $region9: #{down_forward.4} parent=5 // pred_check
      _
    $region10: #{down_forward.4} parent=5 // pred_check_branch
      %94 = sbr.rel (%p91) target = $region12
    $region11: #{down_forward.4} parent=5 // pred_region
      %s95 = ssub.s32 %s8, 1
      // Predicated region
      $region13: #{down_forward.4} parent=11 // pred_check
        %p96 = pneg %p55
      $region14: #{down_forward.4} parent=11 // pred_check_branch
        %98 = sbr.rel (%p96) target = $region16
      $region15: #{down_forward.4} parent=11 // pred_region
        _
      $region16: #{down_forward.4} parent=11 // pred_fallthru
        _
    $region12: #{down_forward.4} parent=5 // pred_fallthru
      _
    %p99 = scmp.lt.s32.totalorder %s8, 2
    // Predicated region
    $region17: #{down_forward.4} parent=5 // pred_check
      %p100 = pneg %p99
    $region18: #{down_forward.4} parent=5 // pred_check_branch
      %102 = sbr.rel (%p100) target = $region20
    $region19: #{down_forward.4} parent=5 // pred_region
      // Predicated region
      $region21: #{down_forward.4} parent=19 // pred_check
        %p103 = pneg %p28
      $region22: #{down_forward.4} parent=19 // pred_check_branch
        %105 = sbr.rel (%p103) target = $region24
      $region23: #{down_forward.4} parent=19 // pred_region
        %s106 = smul.u32 8, %s8
        %p107 = scmp.lt.s32.totalorder %s106, 15
        %s108 = scalar_select %p107, %s106, 15
        %s109 = smul.addr %s108, 4
        %s110 = scalar_lea.vmem %s0, %s109
        %s111 = smul.u32 8, %s8
      $region24: #{down_forward.4} parent=19 // pred_fallthru
        _
    $region20: #{down_forward.4} parent=5 // pred_fallthru
      _
    %p112 = scmp.le.s32.totalorder 1, %s8
    %p113 = scmp.lt.s32.totalorder %s8, 3
    %p114 = pnand %p112, %p113
    %p115 = pneg %p114
    // Predicated region
    $region25: #{down_forward.4} parent=5 // pred_check
      _
    $region26: #{down_forward.4} parent=5 // pred_check_branch
      %117 = sbr.rel (%p114) target = $region28
    $region27: #{down_forward.4} parent=5 // pred_region
      %s118 = ssub.s32 %s8, 1
      %s119 = smul.u32 8, %s13
      %p120 = scmp.lt.s32.totalorder %s119, 15
      %s121 = scalar_select %p120, %s119, 15
      %s122 = smul.addr %s121, 4
      %s123 = scalar_lea.vmem %s0, %s122
      %p124 = pneg %p34
      %p125 = pneg %p31
      %p126 = pneg %p55
      %p127 = pneg %p52
      %p128 = pneg %p81
      %p129 = pneg %p78
      %p130 = scmp.lt.s32.totalorder %s13, 1
      %s131 = scalar_select %p130, %s13, 1
      %s132 = smul.addr %s131, 2
      %s133 = scalar_lea.vmem %s2, %s132
      %s134 = smul.u32 8, %s13
      %p135 = scmp.lt.s32.totalorder %s134, 15
      %s136 = scalar_select %p135, %s134, 15
      %s137 = smul.addr %s136, 4
      %s138 = scalar_lea.vmem %s0, %s137
      %s139 = smul.u32 8, %s13
      %p140 = scmp.lt.s32.totalorder %s13, 1
      %s141 = scalar_select %p140, %s13, 1
      %s142 = smul.addr %s141, 2
      %s143 = scalar_lea.vmem %s2, %s142
      %v145 = vld [vmem:[%s138] sm:$0xf]
      %v146 = vld [vmem:[%s138 + $0x4] sm:$0xf]
      %v147 = vld [vmem:[%s138 + $0x8] sm:$0xf]
      %v148 = vld [vmem:[%s138 + $0xc] sm:$0xf]
      %v149 = vld [vmem:[%s138 + $0x10] sm:$0xf]
      %v150 = vld [vmem:[%s138 + $0x14] sm:$0xf]
      %v151 = vld [vmem:[%s138 + $0x18] sm:$0xf]
      %v152 = vld [vmem:[%s138 + $0x1c] sm:$0xf]
      %v153 = vld [vmem:[%s1] sm:$0xf]
      %v154 = vld [vmem:[%s1 + $0x4] sm:$0xf]
      %v155 = vld [vmem:[%s1 + $0x8] sm:$0xf]
      %v156 = vld [vmem:[%s1 + $0xc] sm:$0xf]
      %v157 = vld [vmem:[%s1 + $0x10] sm:$0x3]
      %v166 = vunpack.c.l.b16 %v145
      %v167 = vunpack.c.l.b16 %v146
      %v168 = vunpack.c.l.b16 %v147
      %v169 = vunpack.c.l.b16 %v148
      %v170 = vunpack.c.l.b16 %v149
      %v171 = vunpack.c.l.b16 %v150
      %v172 = vunpack.c.l.b16 %v151
      %v173 = vunpack.c.l.b16 %v152
      %v174 = vpack.c.b16 %v167, %v166
      %v175 = vpack.c.b16 %v169, %v168
      %v176 = vpack.c.b16 %v171, %v170
      %v177 = vpack.c.b16 %v173, %v172
      %v183 = vunpack.c.l.b16 %v153
      %v184 = vunpack.c.l.b16 %v154
      %v185 = vunpack.c.l.b16 %v155
      %v186 = vunpack.c.l.b16 %v156
      %v187 = vunpack.c.l.b16 %v157
      %v188 = vpack.c.b16 %v184, %v183
      %v189 = vpack.c.b16 %v186, %v185
      %v190 = vpack.c.b16 %v187, %v187
      %vm193 = vcmask 293888
      %v195 = vsel %vm193, %v174, 0
      %v198 = vsel %vm193, %v175, 0
      %v201 = vsel %vm193, %v176, 0
      %v204 = vsel %vm193, %v177, 0
      %vm206 = vcmask 1041408
      %v208 = vsel %vm206, %v190, 0
      %210 = vmatprep.subr.bf16.mxu0 0
      %211 = vmatpush1.bf16.msra.mxu0 0
      %212 = vmatprep.subr.bf16.mxu0 0
      %213 = vmatpush1.bf16.msra.mxu0 0
      %214 = vmatprep.subr.bf16.mxu0 0
      %215 = vmatpush1.bf16.msra.mxu0 0
      %216 = vmatprep.subr.bf16.mxu0 0
      %217 = vmatpush1.bf16.msra.mxu0 0
      %218 = vmatprep.subr.bf16.mxu0 0
      %219 = vmatpush1.bf16.msra.mxu0 0
      %220 = vmatprep.subr.bf16.mxu0 0
      %221 = vmatpush1.bf16.msra.mxu0 %v208
      %222 = vmatprep.subr.bf16.mxu0 0
      %223 = vmatpush1.bf16.msra.mxu0 %v189
      %224 = vmatprep.subr.bf16.mxu0 0
      %225 = vmatpush1.bf16.msra.mxu0 %v188
      %226 = vmatprep.subr.bf16.mxu0 0
      %227 = vmatpush2.bf16.msra.mxu0 0
      %228 = vmatprep.subr.bf16.mxu0 0
      %229 = vmatpush2.bf16.msra.mxu0 0
      %230 = vmatprep.subr.bf16.mxu0 0
      %231 = vmatpush2.bf16.msra.mxu0 0
      %232 = vmatprep.subr.bf16.mxu0 0
      %233 = vmatpush2.bf16.msra.mxu0 0
      %234 = vmatprep.subr.bf16.mxu0 0
      %235 = vmatpush2.bf16.msra.mxu0 0
      %236 = vmatprep.subr.bf16.mxu0 0
      %237 = vmatpush2.bf16.msra.mxu0 0
      %238 = vmatprep.subr.bf16.mxu0 0
      %239 = vmatpush2.bf16.msra.mxu0 0
      %240 = vmatprep.subr.bf16.mxu0 0
      %241 = vmatpush2.bf16.msra.mxu0 0
      %242 = vmatprep.mubr.bf16.mxu0 0
      %243 = vmatmul.mubr.bf16.gmra.mxu0 %v195
      %v244 = vpop.f32.mrf.mxu0
      %v245 = vadd.f32 0.0, %v244
      %v246 = vpop.f32.mrf.mxu0
      %v247 = vpop.f32.mrf.mxu0
      %v248 = vadd.f32 0.0, %v247
      %v249 = vpop.f32.mrf.mxu0
      %250 = vmatprep.mubr.bf16.mxu0 0
      %251 = vmatmul.mubr.bf16.gmra.mxu0 %v198
      %v252 = vpop.f32.mrf.mxu0
      %v253 = vadd.f32 0.0, %v252
      %v254 = vpop.f32.mrf.mxu0
      %v255 = vpop.f32.mrf.mxu0
      %v256 = vadd.f32 0.0, %v255
      %v257 = vpop.f32.mrf.mxu0
      %258 = vmatprep.mubr.bf16.mxu0 0
      %259 = vmatmul.mubr.bf16.gmra.mxu0 %v201
      %v260 = vpop.f32.mrf.mxu0
      %v261 = vadd.f32 0.0, %v260
      %v262 = vpop.f32.mrf.mxu0
      %v263 = vpop.f32.mrf.mxu0
      %v264 = vadd.f32 0.0, %v263
      %v265 = vpop.f32.mrf.mxu0
      %266 = vmatprep.mubr.bf16.mxu0 0
      %267 = vmatmul.mubr.bf16.gmra.mxu0 %v204
      %v268 = vpop.f32.mrf.mxu0
      %v269 = vadd.f32 0.0, %v268
      %v270 = vpop.f32.mrf.mxu0
      %v271 = vpop.f32.mrf.mxu0
      %v272 = vadd.f32 0.0, %v271
      %v273 = vpop.f32.mrf.mxu0
      %274 = vdwg.mxu0
      %v275 = vadd.f32 %v245, %v248
      %v276 = vadd.f32 %v275, %v253
      %v277 = vadd.f32 %v276, %v256
      %v278 = vadd.f32 %v277, %v261
      %v279 = vadd.f32 %v278, %v264
      %v280 = vadd.f32 %v279, %v269
      %v281 = vadd.f32 %v280, %v272
      %v282 = vrot.slane %v281, 4
      %v283 = vadd.f32 %v281, %v282
      %v284 = vrot.slane %v283, 2
      %v285 = vadd.f32 %v283, %v284
      %v286 = vrot.slane %v285, 1
      %v287 = vadd.f32 %v285, %v286
      %v288 = vmul.f32 %v245, %v245
      %v289 = vmul.f32 %v248, %v248
      %v290 = vmul.f32 %v253, %v253
      %v291 = vmul.f32 %v256, %v256
      %v292 = vmul.f32 %v261, %v261
      %v293 = vmul.f32 %v264, %v264
      %v294 = vmul.f32 %v269, %v269
      %v295 = vmul.f32 %v272, %v272
      %v296 = vadd.f32 %v288, %v289
      %v297 = vadd.f32 %v296, %v290
      %v298 = vadd.f32 %v297, %v291
      %v299 = vadd.f32 %v298, %v292
      %v300 = vadd.f32 %v299, %v293
      %v301 = vadd.f32 %v300, %v294
      %v302 = vadd.f32 %v301, %v295
      %v303 = vrot.slane %v302, 4
      %v304 = vadd.f32 %v302, %v303
      %v305 = vrot.slane %v304, 2
      %v306 = vadd.f32 %v304, %v305
      %v307 = vrot.slane %v306, 1
      %v308 = vadd.f32 %v306, %v307
      %vm309 = vcmask 1040384
      %v310 = vsel %vm309, %v287, %v308
      %311 = vst [vmem:[%s143] sm:$0x3] %v310
      %p312 = scmp.lt.s32.totalorder %s13, 1
      %s313 = scalar_select %p312, %s13, 1
      %s314 = smul.addr %s313, 2
      %s315 = scalar_lea.vmem %s2, %s314
      // Predicated region
      $region29: #{down_forward.4} parent=27 // pred_check
        %p316 = pneg %p78
      $region30: #{down_forward.4} parent=27 // pred_check_branch
        %318 = sbr.rel (%p316) target = $region32
      $region31: #{down_forward.4} parent=27 // pred_region
        _
      $region32: #{down_forward.4} parent=27 // pred_fallthru
        _
    $region28: #{down_forward.4} parent=5 // pred_fallthru
      _
    %p319 = scmp.le.s32.totalorder 2, %s8
    // Predicated region
    $region33: #{down_forward.4} parent=5 // pred_check
      %p320 = pneg %p319
    $region34: #{down_forward.4} parent=5 // pred_check_branch
      %322 = sbr.rel (%p320) target = $region36
    $region35: #{down_forward.4} parent=5 // pred_region
      %s323 = ssub.s32 %s8, 2
      // Predicated region
      $region37: #{down_forward.4} parent=35 // pred_check
        %p324 = pneg %p84
      $region38: #{down_forward.4} parent=35 // pred_check_branch
        %326 = sbr.rel (%p324) target = $region40
      $region39: #{down_forward.4} parent=35 // pred_region
        %p327 = scmp.lt.s32.totalorder %s14, 1
        %s328 = scalar_select %p327, %s14, 1
        %s329 = smul.addr %s328, 2
        %s330 = scalar_lea.vmem %s2, %s329
      $region40: #{down_forward.4} parent=35 // pred_fallthru
        _
    $region36: #{down_forward.4} parent=5 // pred_fallthru
      _
  $region6: #{down_forward.4} parent=0 // loop_footer
    %s12 = sadd.s32 1, %s8
  $region7: #{down_forward.4} parent=0 // loop_footer_branch
    %7 = sbr.rel target = $region3
  $region8: #{down_forward.4} parent=0 // loop_exit
    _

// kernel: down_forward.5
$region0: #{down_forward.5}
  #allocation0 [shape = 'u32[]', space=smem, size = 0x4, offset = 0x4, fixed_abs, tag = 'smem constant byte address 0x4 - core index']
  #allocation1 [shape = 'u32[144,128]{1,0:T(1,128)}', space=vmem, size = 0x12000, scoped, tag = 'internal scratch']
  %s0 = inlined_call_operand.vmem [shape: bf16[128,36], index: 0, kind: input, shape index: {}]
  %s1 = inlined_call_operand.vmem [shape: bf16[36,128], index: 1, kind: input, shape index: {}]
  %s2 = inlined_call_operand.vmem [shape: f32[1,128], index: 2, kind: input, shape index: {}]
  %s3 = inlined_call_operand.vmem [shape: f32[1,128], index: 3, kind: input, shape index: {}]
  %s4 = inlined_call_operand.vmem [shape: bf16[128,128], index: 4, kind: output, shape index: {}]
  %s5 = sld [smem:[#allocation0]]
  $region49: #{down_forward.5} parent=0
    _
  %s7 = ssub.s32 1, %s5
  %s8 = scalar_select 0, %s7, %s5
  loop: start=0, step=1, limit=4
  $region2: #{down_forward.5} parent=0 // loop_pre_header
    _
  $region3: #{down_forward.5} parent=0 // loop_header
    %s10 = sphi 0, %s14
    %p11 = scmp.ge.s32.totalorder %s10, 4
    %s20 = sphi 0, %s22
    %s23 = sphi 0, %s20
    %s24 = sphi 0, %s23
    %s40 = sphi 0, %s24
    %s44 = sphi 0, %s44
    %s46 = sphi 0, %s44
    %s47 = sphi 0, %s46
    %s61 = sphi 0, %s47
    %s65 = sphi 0, %s65
    %s67 = sphi 0, %s65
    %s68 = sphi 0, %s67
    %s82 = sphi 0, %s68
    %s86 = sphi 0, %s86
    %s88 = sphi 0, %s86
    %s89 = sphi 0, %s88
    %s103 = sphi 0, %s89
    %s109 = sphi 0, %s111
    %s112 = sphi 0, %s109
    %s113 = sphi 0, %s112
    %s129 = sphi 0, %s113
  $region4: #{down_forward.5} parent=0 // loop_header_branch
    %13 = sbr.rel (%p11) target = $region8
  $region5: #{down_forward.5} parent=0 // loop_body
    %s15 = ssub.s32 %s10, 1
    %s16 = ssub.s32 %s10, 2
    %s17 = sadd.s32 %s10, 1
    %s18 = ssub.s32 %s10, %s17
    %p19 = scmp.eq.s32.totalorder %s18, 0
    %s21 = sadd.s32 %s20, 1
    %s22 = scalar_select %p19, %s20, %s21
    %p25 = pneg %p19
    %p26 = scmp.eq.s32.totalorder %s10, 1
    %p27 = por %p25, %p26
    %p28 = scmp.ne.s32.totalorder %s20, %s23
    %p29 = scmp.eq.s32.totalorder %s10, 0
    %p30 = por %p28, %p29
    %p31 = scmp.ne.s32.totalorder %s20, %s23
    %p32 = scmp.eq.s32.totalorder %s15, 1
    %p33 = por %p31, %p32
    %p34 = scmp.ne.s32.totalorder %s23, %s24
    %p35 = scmp.eq.s32.totalorder %s15, 0
    %p36 = por %p34, %p35
    %p37 = scmp.ne.s32.totalorder %s23, %s24
    %p38 = scmp.eq.s32.totalorder %s16, 1
    %p39 = por %p37, %p38
    %p41 = scmp.ne.s32.totalorder %s24, %s40
    %p42 = scmp.eq.s32.totalorder %s16, 0
    %p43 = por %p41, %p42
    %s45 = sadd.s32 %s44, 1
    %p48 = scmp.eq.s32.totalorder %s10, 1
    %p49 = scmp.ne.s32.totalorder %s44, %s46
    %p50 = scmp.eq.s32.totalorder %s10, 0
    %p51 = por %p49, %p50
    %p52 = scmp.ne.s32.totalorder %s44, %s46
    %p53 = scmp.eq.s32.totalorder %s15, 1
    %p54 = por %p52, %p53
    %p55 = scmp.ne.s32.totalorder %s46, %s47
    %p56 = scmp.eq.s32.totalorder %s15, 0
    %p57 = por %p55, %p56
    %p58 = scmp.ne.s32.totalorder %s46, %s47
    %p59 = scmp.eq.s32.totalorder %s16, 1
    %p60 = por %p58, %p59
    %p62 = scmp.ne.s32.totalorder %s47, %s61
    %p63 = scmp.eq.s32.totalorder %s16, 0
    %p64 = por %p62, %p63
    %s66 = sadd.s32 %s65, 1
    %p69 = scmp.eq.s32.totalorder %s10, 1
    %p70 = scmp.ne.s32.totalorder %s65, %s67
    %p71 = scmp.eq.s32.totalorder %s10, 0
    %p72 = por %p70, %p71
    %p73 = scmp.ne.s32.totalorder %s65, %s67
    %p74 = scmp.eq.s32.totalorder %s15, 1
    %p75 = por %p73, %p74
    %p76 = scmp.ne.s32.totalorder %s67, %s68
    %p77 = scmp.eq.s32.totalorder %s15, 0
    %p78 = por %p76, %p77
    %p79 = scmp.ne.s32.totalorder %s67, %s68
    %p80 = scmp.eq.s32.totalorder %s16, 1
    %p81 = por %p79, %p80
    %p83 = scmp.ne.s32.totalorder %s68, %s82
    %p84 = scmp.eq.s32.totalorder %s16, 0
    %p85 = por %p83, %p84
    %s87 = sadd.s32 %s86, 1
    %p90 = scmp.eq.s32.totalorder %s10, 1
    %p91 = scmp.ne.s32.totalorder %s86, %s88
    %p92 = scmp.eq.s32.totalorder %s10, 0
    %p93 = por %p91, %p92
    %p94 = scmp.ne.s32.totalorder %s86, %s88
    %p95 = scmp.eq.s32.totalorder %s15, 1
    %p96 = por %p94, %p95
    %p97 = scmp.ne.s32.totalorder %s88, %s89
    %p98 = scmp.eq.s32.totalorder %s15, 0
    %p99 = por %p97, %p98
    %p100 = scmp.ne.s32.totalorder %s88, %s89
    %p101 = scmp.eq.s32.totalorder %s16, 1
    %p102 = por %p100, %p101
    %p104 = scmp.ne.s32.totalorder %s89, %s103
    %p105 = scmp.eq.s32.totalorder %s16, 0
    %p106 = por %p104, %p105
    %s107 = ssub.s32 %s10, %s17
    %p108 = scmp.eq.s32.totalorder %s107, 0
    %s110 = sadd.s32 %s109, 1
    %s111 = scalar_select %p108, %s109, %s110
    %p114 = pneg %p108
    %p115 = scmp.eq.s32.totalorder %s10, 1
    %p116 = por %p114, %p115
    %p117 = scmp.ne.s32.totalorder %s109, %s112
    %p118 = scmp.eq.s32.totalorder %s10, 0
    %p119 = por %p117, %p118
    %p120 = scmp.ne.s32.totalorder %s109, %s112
    %p121 = scmp.eq.s32.totalorder %s15, 1
    %p122 = por %p120, %p121
    %p123 = scmp.ne.s32.totalorder %s112, %s113
    %p124 = scmp.eq.s32.totalorder %s15, 0
    %p125 = por %p123, %p124
    %p126 = scmp.ne.s32.totalorder %s112, %s113
    %p127 = scmp.eq.s32.totalorder %s16, 1
    %p128 = por %p126, %p127
    %p130 = scmp.ne.s32.totalorder %s113, %s129
    %p131 = scmp.eq.s32.totalorder %s16, 0
    %p132 = por %p130, %p131
    %p133 = scmp.le.s32.totalorder 1, %s10
    %p134 = scmp.lt.s32.totalorder %s10, 3
    %p135 = pnand %p133, %p134
    %p136 = pneg %p135
    // Predicated region
    $region9: #{down_forward.5} parent=5 // pred_check
      _
    $region10: #{down_forward.5} parent=5 // pred_check_branch
      %138 = sbr.rel (%p135) target = $region12
    $region11: #{down_forward.5} parent=5 // pred_region
      %s139 = ssub.s32 %s10, 1
      // Predicated region
      $region13: #{down_forward.5} parent=11 // pred_check
        %p140 = pneg %p57
      $region14: #{down_forward.5} parent=11 // pred_check_branch
        %142 = sbr.rel (%p140) target = $region16
      $region15: #{down_forward.5} parent=11 // pred_region
        _
      $region16: #{down_forward.5} parent=11 // pred_fallthru
        _
      // Predicated region
      $region17: #{down_forward.5} parent=11 // pred_check
        %p143 = pneg %p78
      $region18: #{down_forward.5} parent=11 // pred_check_branch
        %145 = sbr.rel (%p143) target = $region20
      $region19: #{down_forward.5} parent=11 // pred_region
        _
      $region20: #{down_forward.5} parent=11 // pred_fallthru
        _
      // Predicated region
      $region21: #{down_forward.5} parent=11 // pred_check
        %p146 = pneg %p99
      $region22: #{down_forward.5} parent=11 // pred_check_branch
        %148 = sbr.rel (%p146) target = $region24
      $region23: #{down_forward.5} parent=11 // pred_region
        _
      $region24: #{down_forward.5} parent=11 // pred_fallthru
        _
    $region12: #{down_forward.5} parent=5 // pred_fallthru
      _
    %p149 = scmp.lt.s32.totalorder %s10, 2
    // Predicated region
    $region25: #{down_forward.5} parent=5 // pred_check
      %p150 = pneg %p149
    $region26: #{down_forward.5} parent=5 // pred_check_branch
      %152 = sbr.rel (%p150) target = $region28
    $region27: #{down_forward.5} parent=5 // pred_region
      // Predicated region
      $region29: #{down_forward.5} parent=27 // pred_check
        %p153 = pneg %p30
      $region30: #{down_forward.5} parent=27 // pred_check_branch
        %155 = sbr.rel (%p153) target = $region32
      $region31: #{down_forward.5} parent=27 // pred_region
        %s156 = smul.u32 8, %s10
        %p157 = scmp.lt.s32.totalorder %s156, 15
        %s158 = scalar_select %p157, %s156, 15
        %s159 = smul.addr %s158, 4
        %s160 = scalar_lea.vmem %s0, %s159
        %s161 = smul.u32 8, %s10
      $region32: #{down_forward.5} parent=27 // pred_fallthru
        _
    $region28: #{down_forward.5} parent=5 // pred_fallthru
      _
    %p162 = scmp.le.s32.totalorder 1, %s10
    %p163 = scmp.lt.s32.totalorder %s10, 3
    %p164 = pnand %p162, %p163
    %p165 = pneg %p164
    // Predicated region
    $region33: #{down_forward.5} parent=5 // pred_check
      _
    $region34: #{down_forward.5} parent=5 // pred_check_branch
      %167 = sbr.rel (%p164) target = $region36
    $region35: #{down_forward.5} parent=5 // pred_region
      %s168 = ssub.s32 %s10, 1
      %s169 = smul.u32 8, %s15
      %p170 = scmp.lt.s32.totalorder %s169, 15
      %s171 = scalar_select %p170, %s169, 15
      %s172 = smul.addr %s171, 4
      %s173 = scalar_lea.vmem %s0, %s172
      %p174 = pneg %p36
      %p175 = pneg %p33
      %p176 = pneg %p57
      %p177 = pneg %p54
      %p178 = pneg %p78
      %p179 = pneg %p75
      %p180 = pneg %p99
      %p181 = pneg %p96
      %p182 = pneg %p125
      %p183 = pneg %p122
      %s184 = smul.u32 8, %s15
      %p185 = scmp.lt.s32.totalorder %s184, 15
      %s186 = scalar_select %p185, %s184, 15
      %s187 = smul.addr %s186, 4
      %s188 = scalar_lea.vmem %s4, %s187
      %s189 = smul.u32 8, %s15
      %p190 = scmp.lt.s32.totalorder %s189, 15
      %s191 = scalar_select %p190, %s189, 15
      %s192 = smul.addr %s191, 4
      %s193 = scalar_lea.vmem %s0, %s192
      %s194 = smul.u32 8, %s15
      %s195 = smul.u32 8, %s15
      %p196 = scmp.lt.s32.totalorder %s195, 15
      %s197 = scalar_select %p196, %s195, 15
      %s198 = smul.addr %s197, 4
      %s199 = scalar_lea.vmem %s4, %s198
      %s200 = smul.u32 8, %s15
      %v202 = vld [vmem:[%s193] sm:$0xf]
      %v203 = vld [vmem:[%s193 + $0x4] sm:$0xf]
      %v204 = vld [vmem:[%s193 + $0x8] sm:$0xf]
      %v205 = vld [vmem:[%s193 + $0xc] sm:$0xf]
      %v206 = vld [vmem:[%s193 + $0x10] sm:$0xf]
      %v207 = vld [vmem:[%s193 + $0x14] sm:$0xf]
      %v208 = vld [vmem:[%s193 + $0x18] sm:$0xf]
      %v209 = vld [vmem:[%s193 + $0x1c] sm:$0xf]
      %v210 = vld [vmem:[%s1] sm:$0xf]
      %v211 = vld [vmem:[%s1 + $0x4] sm:$0xf]
      %v212 = vld [vmem:[%s1 + $0x8] sm:$0xf]
      %v213 = vld [vmem:[%s1 + $0xc] sm:$0xf]
      %v214 = vld [vmem:[%s1 + $0x10] sm:$0x3]
      %v223 = vunpack.c.l.b16 %v202
      %v224 = vunpack.c.l.b16 %v203
      %v225 = vunpack.c.l.b16 %v204
      %v226 = vunpack.c.l.b16 %v205
      %v227 = vunpack.c.l.b16 %v206
      %v228 = vunpack.c.l.b16 %v207
      %v229 = vunpack.c.l.b16 %v208
      %v230 = vunpack.c.l.b16 %v209
      %v231 = vpack.c.b16 %v224, %v223
      %v232 = vpack.c.b16 %v226, %v225
      %v233 = vpack.c.b16 %v228, %v227
      %v234 = vpack.c.b16 %v230, %v229
      %v240 = vunpack.c.l.b16 %v210
      %v241 = vunpack.c.l.b16 %v211
      %v242 = vunpack.c.l.b16 %v212
      %v243 = vunpack.c.l.b16 %v213
      %v244 = vunpack.c.l.b16 %v214
      %v245 = vpack.c.b16 %v241, %v240
      %v246 = vpack.c.b16 %v243, %v242
      %v247 = vpack.c.b16 %v244, %v244
      %vm250 = vcmask 293888
      %v252 = vsel %vm250, %v231, 0
      %v255 = vsel %vm250, %v232, 0
      %v258 = vsel %vm250, %v233, 0
      %v261 = vsel %vm250, %v234, 0
      %vm263 = vcmask 1041408
      %v265 = vsel %vm263, %v247, 0
      %267 = vmatprep.subr.bf16.mxu0 0
      %268 = vmatpush1.bf16.msra.mxu0 0
      %269 = vmatprep.subr.bf16.mxu0 0
      %270 = vmatpush1.bf16.msra.mxu0 0
      %271 = vmatprep.subr.bf16.mxu0 0
      %272 = vmatpush1.bf16.msra.mxu0 0
      %273 = vmatprep.subr.bf16.mxu0 0
      %274 = vmatpush1.bf16.msra.mxu0 0
      %275 = vmatprep.subr.bf16.mxu0 0
      %276 = vmatpush1.bf16.msra.mxu0 0
      %277 = vmatprep.subr.bf16.mxu0 0
      %278 = vmatpush1.bf16.msra.mxu0 %v265
      %279 = vmatprep.subr.bf16.mxu0 0
      %280 = vmatpush1.bf16.msra.mxu0 %v246
      %281 = vmatprep.subr.bf16.mxu0 0
      %282 = vmatpush1.bf16.msra.mxu0 %v245
      %283 = vmatprep.subr.bf16.mxu0 0
      %284 = vmatpush2.bf16.msra.mxu0 0
      %285 = vmatprep.subr.bf16.mxu0 0
      %286 = vmatpush2.bf16.msra.mxu0 0
      %287 = vmatprep.subr.bf16.mxu0 0
      %288 = vmatpush2.bf16.msra.mxu0 0
      %289 = vmatprep.subr.bf16.mxu0 0
      %290 = vmatpush2.bf16.msra.mxu0 0
      %291 = vmatprep.subr.bf16.mxu0 0
      %292 = vmatpush2.bf16.msra.mxu0 0
      %293 = vmatprep.subr.bf16.mxu0 0
      %294 = vmatpush2.bf16.msra.mxu0 0
      %295 = vmatprep.subr.bf16.mxu0 0
      %296 = vmatpush2.bf16.msra.mxu0 0
      %297 = vmatprep.subr.bf16.mxu0 0
      %298 = vmatpush2.bf16.msra.mxu0 0
      %299 = vmatprep.mubr.bf16.mxu0 0
      %300 = vmatmul.mubr.bf16.gmra.mxu0 %v252
      %v301 = vpop.f32.mrf.mxu0
      %v302 = vadd.f32 0.0, %v301
      %v303 = vpop.f32.mrf.mxu0
      %v304 = vpop.f32.mrf.mxu0
      %v305 = vadd.f32 0.0, %v304
      %v306 = vpop.f32.mrf.mxu0
      %307 = vmatprep.mubr.bf16.mxu0 0
      %308 = vmatmul.mubr.bf16.gmra.mxu0 %v255
      %v309 = vpop.f32.mrf.mxu0
      %v310 = vadd.f32 0.0, %v309
      %v311 = vpop.f32.mrf.mxu0
      %v312 = vpop.f32.mrf.mxu0
      %v313 = vadd.f32 0.0, %v312
      %v314 = vpop.f32.mrf.mxu0
      %315 = vmatprep.mubr.bf16.mxu0 0
      %316 = vmatmul.mubr.bf16.gmra.mxu0 %v258
      %v317 = vpop.f32.mrf.mxu0
      %v318 = vadd.f32 0.0, %v317
      %v319 = vpop.f32.mrf.mxu0
      %v320 = vpop.f32.mrf.mxu0
      %v321 = vadd.f32 0.0, %v320
      %v322 = vpop.f32.mrf.mxu0
      %323 = vmatprep.mubr.bf16.mxu0 0
      %324 = vmatmul.mubr.bf16.gmra.mxu0 %v261
      %v325 = vpop.f32.mrf.mxu0
      %v326 = vadd.f32 0.0, %v325
      %v327 = vpop.f32.mrf.mxu0
      %v328 = vpop.f32.mrf.mxu0
      %v329 = vadd.f32 0.0, %v328
      %v330 = vpop.f32.mrf.mxu0
      %331 = vdwg.mxu0
      %v332 = vld [vmem:[%s2] sm:$0x1]
      %v334 = vlaneseq
      %v335 = vshrl.u32 %v334, 7
      %v336 = vsub.s32 0, %v335
      %v337 = vrot.slane %v332, %v336
      %v339 = vmul.f32 %v302, %v337
      %v340 = vmul.f32 %v305, %v337
      %v341 = vmul.f32 %v310, %v337
      %v342 = vmul.f32 %v313, %v337
      %v343 = vmul.f32 %v318, %v337
      %v344 = vmul.f32 %v321, %v337
      %v345 = vmul.f32 %v326, %v337
      %v346 = vmul.f32 %v329, %v337
      %v347 = vld [vmem:[%s3] sm:$0x1]
      %v349 = vlaneseq
      %v350 = vshrl.u32 %v349, 7
      %v351 = vsub.s32 0, %v350
      %v352 = vrot.slane %v347, %v351
      %v354 = vadd.f32 %v339, %v352
      %v355 = vadd.f32 %v340, %v352
      %v356 = vadd.f32 %v341, %v352
      %v357 = vadd.f32 %v342, %v352
      %v358 = vadd.f32 %v343, %v352
      %v359 = vadd.f32 %v344, %v352
      %v360 = vadd.f32 %v345, %v352
      %v361 = vadd.f32 %v346, %v352
      %v362 = vmax.f32 %v354, 0.0
      %v363 = vmax.f32 %v355, 0.0
      %v364 = vmax.f32 %v356, 0.0
      %v365 = vmax.f32 %v357, 0.0
      %v366 = vmax.f32 %v358, 0.0
      %v367 = vmax.f32 %v359, 0.0
      %v368 = vmax.f32 %v360, 0.0
      %v369 = vmax.f32 %v361, 0.0
      %v370 = vpack.c.bf16 %v363, %v362
      %v371 = vpack.c.bf16 %v365, %v364
      %v372 = vpack.c.bf16 %v367, %v366
      %v373 = vpack.c.bf16 %v369, %v368
      %v378 = vunpack.c.l.b16 %v370
      %v379 = vunpack.c.h.b16 %v370
      %v380 = vunpack.c.l.b16 %v371
      %v381 = vunpack.c.h.b16 %v371
      %v382 = vunpack.c.l.b16 %v372
      %v383 = vunpack.c.h.b16 %v372
      %v384 = vunpack.c.l.b16 %v373
      %v385 = vunpack.c.h.b16 %v373
      %v386 = vpack.c.b16 %v378, %v378
      %v387 = vpack.c.b16 %v379, %v379
      %v388 = vpack.c.b16 %v380, %v380
      %v389 = vpack.c.b16 %v381, %v381
      %v390 = vpack.c.b16 %v382, %v382
      %v391 = vpack.c.b16 %v383, %v383
      %v392 = vpack.c.b16 %v384, %v384
      %v393 = vpack.c.b16 %v385, %v385
      %402 = vst [vmem:[%s199] sm:$0xf] %v386
      %403 = vst [vmem:[%s199 + $0x4] sm:$0xf] %v387
      %404 = vst [vmem:[%s199 + $0x8] sm:$0xf] %v388
      %405 = vst [vmem:[%s199 + $0xc] sm:$0xf] %v389
      %406 = vst [vmem:[%s199 + $0x10] sm:$0xf] %v390
      %407 = vst [vmem:[%s199 + $0x14] sm:$0xf] %v391
      %408 = vst [vmem:[%s199 + $0x18] sm:$0xf] %v392
      %409 = vst [vmem:[%s199 + $0x1c] sm:$0xf] %v393
      %s410 = smul.u32 8, %s15
      %p411 = scmp.lt.s32.totalorder %s410, 15
      %s412 = scalar_select %p411, %s410, 15
      %s413 = smul.addr %s412, 4
      %s414 = scalar_lea.vmem %s4, %s413
      // Predicated region
      $region37: #{down_forward.5} parent=35 // pred_check
        %p415 = pneg %p122
      $region38: #{down_forward.5} parent=35 // pred_check_branch
        %417 = sbr.rel (%p415) target = $region40
      $region39: #{down_forward.5} parent=35 // pred_region
        %s418 = smul.u32 8, %s15
      $region40: #{down_forward.5} parent=35 // pred_fallthru
        _
    $region36: #{down_forward.5} parent=5 // pred_fallthru
      _
    %p419 = scmp.le.s32.totalorder 2, %s10
    // Predicated region
    $region41: #{down_forward.5} parent=5 // pred_check
      %p420 = pneg %p419
    $region42: #{down_forward.5} parent=5 // pred_check_branch
      %422 = sbr.rel (%p420) target = $region44
    $region43: #{down_forward.5} parent=5 // pred_region
      %s423 = ssub.s32 %s10, 2
      // Predicated region
      $region45: #{down_forward.5} parent=43 // pred_check
        %p424 = pneg %p128
      $region46: #{down_forward.5} parent=43 // pred_check_branch
        %426 = sbr.rel (%p424) target = $region48
      $region47: #{down_forward.5} parent=43 // pred_region
        %s427 = smul.u32 8, %s16
        %p428 = scmp.lt.s32.totalorder %s427, 15
        %s429 = scalar_select %p428, %s427, 15
        %s430 = smul.addr %s429, 4
        %s431 = scalar_lea.vmem %s4, %s430
      $region48: #{down_forward.5} parent=43 // pred_fallthru
        _
    $region44: #{down_forward.5} parent=5 // pred_fallthru
      _
  $region6: #{down_forward.5} parent=0 // loop_footer
    %s14 = sadd.s32 1, %s10
  $region7: #{down_forward.5} parent=0 // loop_footer_branch
    %9 = sbr.rel target = $region3
  $region8: #{down_forward.5} parent=0 // loop_exit
    _

// kernel: down_forward.7
$region0: #{down_forward.7}
  #allocation0 [shape = 'u32[]', space=smem, size = 0x4, offset = 0x4, fixed_abs, tag = 'smem constant byte address 0x4 - core index']
  #allocation1 [shape = 'u32[144,128]{1,0:T(1,128)}', space=vmem, size = 0x12000, scoped, tag = 'internal scratch']
  %s0 = inlined_call_operand.vmem [shape: bf16[128,72], index: 0, kind: input, shape index: {}]
  %s1 = inlined_call_operand.vmem [shape: bf16[72,128], index: 1, kind: input, shape index: {}]
  %s2 = inlined_call_operand.vmem [shape: f32[1,128], index: 2, kind: input, shape index: {}]
  %s3 = inlined_call_operand.vmem [shape: f32[1,128], index: 3, kind: input, shape index: {}]
  %s4 = inlined_call_operand.vmem [shape: bf16[128,128], index: 4, kind: output, shape index: {}]
  %s5 = sld [smem:[#allocation0]]
  $region49: #{down_forward.7} parent=0
    _
  %s7 = ssub.s32 1, %s5
  %s8 = scalar_select 0, %s7, %s5
  loop: start=0, step=1, limit=4
  $region2: #{down_forward.7} parent=0 // loop_pre_header
    _
  $region3: #{down_forward.7} parent=0 // loop_header
    %s10 = sphi 0, %s14
    %p11 = scmp.ge.s32.totalorder %s10, 4
    %s20 = sphi 0, %s22
    %s23 = sphi 0, %s20
    %s24 = sphi 0, %s23
    %s40 = sphi 0, %s24
    %s44 = sphi 0, %s44
    %s46 = sphi 0, %s44
    %s47 = sphi 0, %s46
    %s61 = sphi 0, %s47
    %s65 = sphi 0, %s65
    %s67 = sphi 0, %s65
    %s68 = sphi 0, %s67
    %s82 = sphi 0, %s68
    %s86 = sphi 0, %s86
    %s88 = sphi 0, %s86
    %s89 = sphi 0, %s88
    %s103 = sphi 0, %s89
    %s109 = sphi 0, %s111
    %s112 = sphi 0, %s109
    %s113 = sphi 0, %s112
    %s129 = sphi 0, %s113
  $region4: #{down_forward.7} parent=0 // loop_header_branch
    %13 = sbr.rel (%p11) target = $region8
  $region5: #{down_forward.7} parent=0 // loop_body
    %s15 = ssub.s32 %s10, 1
    %s16 = ssub.s32 %s10, 2
    %s17 = sadd.s32 %s10, 1
    %s18 = ssub.s32 %s10, %s17
    %p19 = scmp.eq.s32.totalorder %s18, 0
    %s21 = sadd.s32 %s20, 1
    %s22 = scalar_select %p19, %s20, %s21
    %p25 = pneg %p19
    %p26 = scmp.eq.s32.totalorder %s10, 1
    %p27 = por %p25, %p26
    %p28 = scmp.ne.s32.totalorder %s20, %s23
    %p29 = scmp.eq.s32.totalorder %s10, 0
    %p30 = por %p28, %p29
    %p31 = scmp.ne.s32.totalorder %s20, %s23
    %p32 = scmp.eq.s32.totalorder %s15, 1
    %p33 = por %p31, %p32
    %p34 = scmp.ne.s32.totalorder %s23, %s24
    %p35 = scmp.eq.s32.totalorder %s15, 0
    %p36 = por %p34, %p35
    %p37 = scmp.ne.s32.totalorder %s23, %s24
    %p38 = scmp.eq.s32.totalorder %s16, 1
    %p39 = por %p37, %p38
    %p41 = scmp.ne.s32.totalorder %s24, %s40
    %p42 = scmp.eq.s32.totalorder %s16, 0
    %p43 = por %p41, %p42
    %s45 = sadd.s32 %s44, 1
    %p48 = scmp.eq.s32.totalorder %s10, 1
    %p49 = scmp.ne.s32.totalorder %s44, %s46
    %p50 = scmp.eq.s32.totalorder %s10, 0
    %p51 = por %p49, %p50
    %p52 = scmp.ne.s32.totalorder %s44, %s46
    %p53 = scmp.eq.s32.totalorder %s15, 1
    %p54 = por %p52, %p53
    %p55 = scmp.ne.s32.totalorder %s46, %s47
    %p56 = scmp.eq.s32.totalorder %s15, 0
    %p57 = por %p55, %p56
    %p58 = scmp.ne.s32.totalorder %s46, %s47
    %p59 = scmp.eq.s32.totalorder %s16, 1
    %p60 = por %p58, %p59
    %p62 = scmp.ne.s32.totalorder %s47, %s61
    %p63 = scmp.eq.s32.totalorder %s16, 0
    %p64 = por %p62, %p63
    %s66 = sadd.s32 %s65, 1
    %p69 = scmp.eq.s32.totalorder %s10, 1
    %p70 = scmp.ne.s32.totalorder %s65, %s67
    %p71 = scmp.eq.s32.totalorder %s10, 0
    %p72 = por %p70, %p71
    %p73 = scmp.ne.s32.totalorder %s65, %s67
    %p74 = scmp.eq.s32.totalorder %s15, 1
    %p75 = por %p73, %p74
    %p76 = scmp.ne.s32.totalorder %s67, %s68
    %p77 = scmp.eq.s32.totalorder %s15, 0
    %p78 = por %p76, %p77
    %p79 = scmp.ne.s32.totalorder %s67, %s68
    %p80 = scmp.eq.s32.totalorder %s16, 1
    %p81 = por %p79, %p80
    %p83 = scmp.ne.s32.totalorder %s68, %s82
    %p84 = scmp.eq.s32.totalorder %s16, 0
    %p85 = por %p83, %p84
    %s87 = sadd.s32 %s86, 1
    %p90 = scmp.eq.s32.totalorder %s10, 1
    %p91 = scmp.ne.s32.totalorder %s86, %s88
    %p92 = scmp.eq.s32.totalorder %s10, 0
    %p93 = por %p91, %p92
    %p94 = scmp.ne.s32.totalorder %s86, %s88
    %p95 = scmp.eq.s32.totalorder %s15, 1
    %p96 = por %p94, %p95
    %p97 = scmp.ne.s32.totalorder %s88, %s89
    %p98 = scmp.eq.s32.totalorder %s15, 0
    %p99 = por %p97, %p98
    %p100 = scmp.ne.s32.totalorder %s88, %s89
    %p101 = scmp.eq.s32.totalorder %s16, 1
    %p102 = por %p100, %p101
    %p104 = scmp.ne.s32.totalorder %s89, %s103
    %p105 = scmp.eq.s32.totalorder %s16, 0
    %p106 = por %p104, %p105
    %s107 = ssub.s32 %s10, %s17
    %p108 = scmp.eq.s32.totalorder %s107, 0
    %s110 = sadd.s32 %s109, 1
    %s111 = scalar_select %p108, %s109, %s110
    %p114 = pneg %p108
    %p115 = scmp.eq.s32.totalorder %s10, 1
    %p116 = por %p114, %p115
    %p117 = scmp.ne.s32.totalorder %s109, %s112
    %p118 = scmp.eq.s32.totalorder %s10, 0
    %p119 = por %p117, %p118
    %p120 = scmp.ne.s32.totalorder %s109, %s112
    %p121 = scmp.eq.s32.totalorder %s15, 1
    %p122 = por %p120, %p121
    %p123 = scmp.ne.s32.totalorder %s112, %s113
    %p124 = scmp.eq.s32.totalorder %s15, 0
    %p125 = por %p123, %p124
    %p126 = scmp.ne.s32.totalorder %s112, %s113
    %p127 = scmp.eq.s32.totalorder %s16, 1
    %p128 = por %p126, %p127
    %p130 = scmp.ne.s32.totalorder %s113, %s129
    %p131 = scmp.eq.s32.totalorder %s16, 0
    %p132 = por %p130, %p131
    %p133 = scmp.le.s32.totalorder 1, %s10
    %p134 = scmp.lt.s32.totalorder %s10, 3
    %p135 = pnand %p133, %p134
    %p136 = pneg %p135
    // Predicated region
    $region9: #{down_forward.7} parent=5 // pred_check
      _
    $region10: #{down_forward.7} parent=5 // pred_check_branch
      %138 = sbr.rel (%p135) target = $region12
    $region11: #{down_forward.7} parent=5 // pred_region
      %s139 = ssub.s32 %s10, 1
      // Predicated region
      $region13: #{down_forward.7} parent=11 // pred_check
        %p140 = pneg %p57
      $region14: #{down_forward.7} parent=11 // pred_check_branch
        %142 = sbr.rel (%p140) target = $region16
      $region15: #{down_forward.7} parent=11 // pred_region
        _
      $region16: #{down_forward.7} parent=11 // pred_fallthru
        _
      // Predicated region
      $region17: #{down_forward.7} parent=11 // pred_check
        %p143 = pneg %p78
      $region18: #{down_forward.7} parent=11 // pred_check_branch
        %145 = sbr.rel (%p143) target = $region20
      $region19: #{down_forward.7} parent=11 // pred_region
        _
      $region20: #{down_forward.7} parent=11 // pred_fallthru
        _
      // Predicated region
      $region21: #{down_forward.7} parent=11 // pred_check
        %p146 = pneg %p99
      $region22: #{down_forward.7} parent=11 // pred_check_branch
        %148 = sbr.rel (%p146) target = $region24
      $region23: #{down_forward.7} parent=11 // pred_region
        _
      $region24: #{down_forward.7} parent=11 // pred_fallthru
        _
    $region12: #{down_forward.7} parent=5 // pred_fallthru
      _
    %p149 = scmp.lt.s32.totalorder %s10, 2
    // Predicated region
    $region25: #{down_forward.7} parent=5 // pred_check
      %p150 = pneg %p149
    $region26: #{down_forward.7} parent=5 // pred_check_branch
      %152 = sbr.rel (%p150) target = $region28
    $region27: #{down_forward.7} parent=5 // pred_region
      // Predicated region
      $region29: #{down_forward.7} parent=27 // pred_check
        %p153 = pneg %p30
      $region30: #{down_forward.7} parent=27 // pred_check_branch
        %155 = sbr.rel (%p153) target = $region32
      $region31: #{down_forward.7} parent=27 // pred_region
        %s156 = smul.u32 8, %s10
        %p157 = scmp.lt.s32.totalorder %s156, 15
        %s158 = scalar_select %p157, %s156, 15
        %s159 = smul.addr %s158, 4
        %s160 = scalar_lea.vmem %s0, %s159
        %s161 = smul.u32 8, %s10
      $region32: #{down_forward.7} parent=27 // pred_fallthru
        _
    $region28: #{down_forward.7} parent=5 // pred_fallthru
      _
    %p162 = scmp.le.s32.totalorder 1, %s10
    %p163 = scmp.lt.s32.totalorder %s10, 3
    %p164 = pnand %p162, %p163
    %p165 = pneg %p164
    // Predicated region
    $region33: #{down_forward.7} parent=5 // pred_check
      _
    $region34: #{down_forward.7} parent=5 // pred_check_branch
      %167 = sbr.rel (%p164) target = $region36
    $region35: #{down_forward.7} parent=5 // pred_region
      %s168 = ssub.s32 %s10, 1
      %s169 = smul.u32 8, %s15
      %p170 = scmp.lt.s32.totalorder %s169, 15
      %s171 = scalar_select %p170, %s169, 15
      %s172 = smul.addr %s171, 4
      %s173 = scalar_lea.vmem %s0, %s172
      %p174 = pneg %p36
      %p175 = pneg %p33
      %p176 = pneg %p57
      %p177 = pneg %p54
      %p178 = pneg %p78
      %p179 = pneg %p75
      %p180 = pneg %p99
      %p181 = pneg %p96
      %p182 = pneg %p125
      %p183 = pneg %p122
      %s184 = smul.u32 8, %s15
      %p185 = scmp.lt.s32.totalorder %s184, 15
      %s186 = scalar_select %p185, %s184, 15
      %s187 = smul.addr %s186, 4
      %s188 = scalar_lea.vmem %s4, %s187
      %s189 = smul.u32 8, %s15
      %p190 = scmp.lt.s32.totalorder %s189, 15
      %s191 = scalar_select %p190, %s189, 15
      %s192 = smul.addr %s191, 4
      %s193 = scalar_lea.vmem %s0, %s192
      %s194 = smul.u32 8, %s15
      %s195 = smul.u32 8, %s15
      %p196 = scmp.lt.s32.totalorder %s195, 15
      %s197 = scalar_select %p196, %s195, 15
      %s198 = smul.addr %s197, 4
      %s199 = scalar_lea.vmem %s4, %s198
      %s200 = smul.u32 8, %s15
      %v202 = vld [vmem:[%s193] sm:$0xf]
      %v203 = vld [vmem:[%s193 + $0x4] sm:$0xf]
      %v204 = vld [vmem:[%s193 + $0x8] sm:$0xf]
      %v205 = vld [vmem:[%s193 + $0xc] sm:$0xf]
      %v206 = vld [vmem:[%s193 + $0x10] sm:$0xf]
      %v207 = vld [vmem:[%s193 + $0x14] sm:$0xf]
      %v208 = vld [vmem:[%s193 + $0x18] sm:$0xf]
      %v209 = vld [vmem:[%s193 + $0x1c] sm:$0xf]
      %v210 = vld [vmem:[%s1] sm:$0xf]
      %v211 = vld [vmem:[%s1 + $0x4] sm:$0xf]
      %v212 = vld [vmem:[%s1 + $0x8] sm:$0xf]
      %v213 = vld [vmem:[%s1 + $0xc] sm:$0xf]
      %v214 = vld [vmem:[%s1 + $0x10] sm:$0xf]
      %v215 = vld [vmem:[%s1 + $0x14] sm:$0xf]
      %v216 = vld [vmem:[%s1 + $0x18] sm:$0xf]
      %v217 = vld [vmem:[%s1 + $0x1c] sm:$0xf]
      %v218 = vld [vmem:[%s1 + $0x20] sm:$0xf]
      %v227 = vunpack.c.l.b16 %v202
      %v228 = vunpack.c.l.b16 %v203
      %v229 = vunpack.c.l.b16 %v204
      %v230 = vunpack.c.l.b16 %v205
      %v231 = vunpack.c.l.b16 %v206
      %v232 = vunpack.c.l.b16 %v207
      %v233 = vunpack.c.l.b16 %v208
      %v234 = vunpack.c.l.b16 %v209
      %v235 = vpack.c.b16 %v228, %v227
      %v236 = vpack.c.b16 %v230, %v229
      %v237 = vpack.c.b16 %v232, %v231
      %v238 = vpack.c.b16 %v234, %v233
      %v248 = vunpack.c.l.b16 %v210
      %v249 = vunpack.c.l.b16 %v211
      %v250 = vunpack.c.l.b16 %v212
      %v251 = vunpack.c.l.b16 %v213
      %v252 = vunpack.c.l.b16 %v214
      %v253 = vunpack.c.l.b16 %v215
      %v254 = vunpack.c.l.b16 %v216
      %v255 = vunpack.c.l.b16 %v217
      %v256 = vunpack.c.l.b16 %v218
      %v257 = vpack.c.b16 %v249, %v248
      %v258 = vpack.c.b16 %v251, %v250
      %v259 = vpack.c.b16 %v253, %v252
      %v260 = vpack.c.b16 %v255, %v254
      %v261 = vpack.c.b16 %v256, %v256
      %vm266 = vcmask 588800
      %v268 = vsel %vm266, %v235, 0
      %v271 = vsel %vm266, %v236, 0
      %v274 = vsel %vm266, %v237, 0
      %v277 = vsel %vm266, %v238, 0
      %vm279 = vcmask 1043456
      %v281 = vsel %vm279, %v261, 0
      %283 = vmatprep.subr.bf16.mxu0 0
      %284 = vmatpush1.bf16.msra.mxu0 0
      %285 = vmatprep.subr.bf16.mxu0 0
      %286 = vmatpush1.bf16.msra.mxu0 0
      %287 = vmatprep.subr.bf16.mxu0 0
      %288 = vmatpush1.bf16.msra.mxu0 0
      %289 = vmatprep.subr.bf16.mxu0 0
      %290 = vmatpush1.bf16.msra.mxu0 %v281
      %291 = vmatprep.subr.bf16.mxu0 0
      %292 = vmatpush1.bf16.msra.mxu0 %v260
      %293 = vmatprep.subr.bf16.mxu0 0
      %294 = vmatpush1.bf16.msra.mxu0 %v259
      %295 = vmatprep.subr.bf16.mxu0 0
      %296 = vmatpush1.bf16.msra.mxu0 %v258
      %297 = vmatprep.subr.bf16.mxu0 0
      %298 = vmatpush1.bf16.msra.mxu0 %v257
      %299 = vmatprep.subr.bf16.mxu0 0
      %300 = vmatpush2.bf16.msra.mxu0 0
      %301 = vmatprep.subr.bf16.mxu0 0
      %302 = vmatpush2.bf16.msra.mxu0 0
      %303 = vmatprep.subr.bf16.mxu0 0
      %304 = vmatpush2.bf16.msra.mxu0 0
      %305 = vmatprep.subr.bf16.mxu0 0
      %306 = vmatpush2.bf16.msra.mxu0 0
      %307 = vmatprep.subr.bf16.mxu0 0
      %308 = vmatpush2.bf16.msra.mxu0 0
      %309 = vmatprep.subr.bf16.mxu0 0
      %310 = vmatpush2.bf16.msra.mxu0 0
      %311 = vmatprep.subr.bf16.mxu0 0
      %312 = vmatpush2.bf16.msra.mxu0 0
      %313 = vmatprep.subr.bf16.mxu0 0
      %314 = vmatpush2.bf16.msra.mxu0 0
      %315 = vmatprep.mubr.bf16.mxu0 0
      %316 = vmatmul.mubr.bf16.gmra.mxu0 %v268
      %v317 = vpop.f32.mrf.mxu0
      %v318 = vadd.f32 0.0, %v317
      %v319 = vpop.f32.mrf.mxu0
      %v320 = vpop.f32.mrf.mxu0
      %v321 = vadd.f32 0.0, %v320
      %v322 = vpop.f32.mrf.mxu0
      %323 = vmatprep.mubr.bf16.mxu0 0
      %324 = vmatmul.mubr.bf16.gmra.mxu0 %v271
      %v325 = vpop.f32.mrf.mxu0
      %v326 = vadd.f32 0.0, %v325
      %v327 = vpop.f32.mrf.mxu0
      %v328 = vpop.f32.mrf.mxu0
      %v329 = vadd.f32 0.0, %v328
      %v330 = vpop.f32.mrf.mxu0
      %331 = vmatprep.mubr.bf16.mxu0 0
      %332 = vmatmul.mubr.bf16.gmra.mxu0 %v274
      %v333 = vpop.f32.mrf.mxu0
      %v334 = vadd.f32 0.0, %v333
      %v335 = vpop.f32.mrf.mxu0
      %v336 = vpop.f32.mrf.mxu0
      %v337 = vadd.f32 0.0, %v336
      %v338 = vpop.f32.mrf.mxu0
      %339 = vmatprep.mubr.bf16.mxu0 0
      %340 = vmatmul.mubr.bf16.gmra.mxu0 %v277
      %v341 = vpop.f32.mrf.mxu0
      %v342 = vadd.f32 0.0, %v341
      %v343 = vpop.f32.mrf.mxu0
      %v344 = vpop.f32.mrf.mxu0
      %v345 = vadd.f32 0.0, %v344
      %v346 = vpop.f32.mrf.mxu0
      %347 = vdwg.mxu0
      %v348 = vld [vmem:[%s2] sm:$0x1]
      %v350 = vlaneseq
      %v351 = vshrl.u32 %v350, 7
      %v352 = vsub.s32 0, %v351
      %v353 = vrot.slane %v348, %v352
      %v355 = vmul.f32 %v318, %v353
      %v356 = vmul.f32 %v321, %v353
      %v357 = vmul.f32 %v326, %v353
      %v358 = vmul.f32 %v329, %v353
      %v359 = vmul.f32 %v334, %v353
      %v360 = vmul.f32 %v337, %v353
      %v361 = vmul.f32 %v342, %v353
      %v362 = vmul.f32 %v345, %v353
      %v363 = vld [vmem:[%s3] sm:$0x1]
      %v365 = vlaneseq
      %v366 = vshrl.u32 %v365, 7
      %v367 = vsub.s32 0, %v366
      %v368 = vrot.slane %v363, %v367
      %v370 = vadd.f32 %v355, %v368
      %v371 = vadd.f32 %v356, %v368
      %v372 = vadd.f32 %v357, %v368
      %v373 = vadd.f32 %v358, %v368
      %v374 = vadd.f32 %v359, %v368
      %v375 = vadd.f32 %v360, %v368
      %v376 = vadd.f32 %v361, %v368
      %v377 = vadd.f32 %v362, %v368
      %v378 = vmax.f32 %v370, 0.0
      %v379 = vmax.f32 %v371, 0.0
      %v380 = vmax.f32 %v372, 0.0
      %v381 = vmax.f32 %v373, 0.0
      %v382 = vmax.f32 %v374, 0.0
      %v383 = vmax.f32 %v375, 0.0
      %v384 = vmax.f32 %v376, 0.0
      %v385 = vmax.f32 %v377, 0.0
      %v386 = vpack.c.bf16 %v379, %v378
      %v387 = vpack.c.bf16 %v381, %v380
      %v388 = vpack.c.bf16 %v383, %v382
      %v389 = vpack.c.bf16 %v385, %v384
      %v394 = vunpack.c.l.b16 %v386
      %v395 = vunpack.c.h.b16 %v386
      %v396 = vunpack.c.l.b16 %v387
      %v397 = vunpack.c.h.b16 %v387
      %v398 = vunpack.c.l.b16 %v388
      %v399 = vunpack.c.h.b16 %v388
      %v400 = vunpack.c.l.b16 %v389
      %v401 = vunpack.c.h.b16 %v389
      %v402 = vpack.c.b16 %v394, %v394
      %v403 = vpack.c.b16 %v395, %v395
      %v404 = vpack.c.b16 %v396, %v396
      %v405 = vpack.c.b16 %v397, %v397
      %v406 = vpack.c.b16 %v398, %v398
      %v407 = vpack.c.b16 %v399, %v399
      %v408 = vpack.c.b16 %v400, %v400
      %v409 = vpack.c.b16 %v401, %v401
      %418 = vst [vmem:[%s199] sm:$0xf] %v402
      %419 = vst [vmem:[%s199 + $0x4] sm:$0xf] %v403
      %420 = vst [vmem:[%s199 + $0x8] sm:$0xf] %v404
      %421 = vst [vmem:[%s199 + $0xc] sm:$0xf] %v405
      %422 = vst [vmem:[%s199 + $0x10] sm:$0xf] %v406
      %423 = vst [vmem:[%s199 + $0x14] sm:$0xf] %v407
      %424 = vst [vmem:[%s199 + $0x18] sm:$0xf] %v408
      %425 = vst [vmem:[%s199 + $0x1c] sm:$0xf] %v409
      %s426 = smul.u32 8, %s15
      %p427 = scmp.lt.s32.totalorder %s426, 15
      %s428 = scalar_select %p427, %s426, 15
      %s429 = smul.addr %s428, 4
      %s430 = scalar_lea.vmem %s4, %s429
      // Predicated region
      $region37: #{down_forward.7} parent=35 // pred_check
        %p431 = pneg %p122
      $region38: #{down_forward.7} parent=35 // pred_check_branch
        %433 = sbr.rel (%p431) target = $region40
      $region39: #{down_forward.7} parent=35 // pred_region
        %s434 = smul.u32 8, %s15
      $region40: #{down_forward.7} parent=35 // pred_fallthru
        _
    $region36: #{down_forward.7} parent=5 // pred_fallthru
      _
    %p435 = scmp.le.s32.totalorder 2, %s10
    // Predicated region
    $region41: #{down_forward.7} parent=5 // pred_check
      %p436 = pneg %p435
    $region42: #{down_forward.7} parent=5 // pred_check_branch
      %438 = sbr.rel (%p436) target = $region44
    $region43: #{down_forward.7} parent=5 // pred_region
      %s439 = ssub.s32 %s10, 2
      // Predicated region
      $region45: #{down_forward.7} parent=43 // pred_check
        %p440 = pneg %p128
      $region46: #{down_forward.7} parent=43 // pred_check_branch
        %442 = sbr.rel (%p440) target = $region48
      $region47: #{down_forward.7} parent=43 // pred_region
        %s443 = smul.u32 8, %s16
        %p444 = scmp.lt.s32.totalorder %s443, 15
        %s445 = scalar_select %p444, %s443, 15
        %s446 = smul.addr %s445, 4
        %s447 = scalar_lea.vmem %s4, %s446
      $region48: #{down_forward.7} parent=43 // pred_fallthru
        _
    $region44: #{down_forward.7} parent=5 // pred_fallthru
      _
  $region6: #{down_forward.7} parent=0 // loop_footer
    %s14 = sadd.s32 1, %s10
  $region7: #{down_forward.7} parent=0 // loop_footer_branch
    %9 = sbr.rel target = $region3
  $region8: #{down_forward.7} parent=0 // loop_exit
    _

// kernel: down_forward.6
$region0: #{down_forward.6}
  #allocation0 [shape = 'u32[]', space=smem, size = 0x4, offset = 0x4, fixed_abs, tag = 'smem constant byte address 0x4 - core index']
  #allocation1 [shape = 'u32[144,128]{1,0:T(1,128)}', space=vmem, size = 0x12000, scoped, tag = 'internal scratch']
  %s0 = inlined_call_operand.vmem [shape: bf16[128,72], index: 0, kind: input, shape index: {}]
  %s1 = inlined_call_operand.vmem [shape: bf16[72,128], index: 1, kind: input, shape index: {}]
  %s2 = inlined_call_operand.vmem [shape: f32[2,2,128], index: 2, kind: output, shape index: {}]
  %s3 = sld [smem:[#allocation0]]
  $region41: #{down_forward.6} parent=0
    _
  %s5 = ssub.s32 1, %s3
  %s6 = scalar_select 0, %s5, %s3
  loop: start=0, step=1, limit=4
  $region2: #{down_forward.6} parent=0 // loop_pre_header
    _
  $region3: #{down_forward.6} parent=0 // loop_header
    %s8 = sphi 0, %s12
    %p9 = scmp.ge.s32.totalorder %s8, 4
    %s18 = sphi 0, %s20
    %s21 = sphi 0, %s18
    %s22 = sphi 0, %s21
    %s38 = sphi 0, %s22
    %s42 = sphi 0, %s42
    %s44 = sphi 0, %s42
    %s45 = sphi 0, %s44
    %s59 = sphi 0, %s45
    %s65 = sphi 0, %s67
    %s68 = sphi 0, %s65
    %s69 = sphi 0, %s68
    %s85 = sphi 0, %s69
  $region4: #{down_forward.6} parent=0 // loop_header_branch
    %11 = sbr.rel (%p9) target = $region8
  $region5: #{down_forward.6} parent=0 // loop_body
    %s13 = ssub.s32 %s8, 1
    %s14 = ssub.s32 %s8, 2
    %s15 = sadd.s32 %s8, 1
    %s16 = ssub.s32 %s8, %s15
    %p17 = scmp.eq.s32.totalorder %s16, 0
    %s19 = sadd.s32 %s18, 1
    %s20 = scalar_select %p17, %s18, %s19
    %p23 = pneg %p17
    %p24 = scmp.eq.s32.totalorder %s8, 1
    %p25 = por %p23, %p24
    %p26 = scmp.ne.s32.totalorder %s18, %s21
    %p27 = scmp.eq.s32.totalorder %s8, 0
    %p28 = por %p26, %p27
    %p29 = scmp.ne.s32.totalorder %s18, %s21
    %p30 = scmp.eq.s32.totalorder %s13, 1
    %p31 = por %p29, %p30
    %p32 = scmp.ne.s32.totalorder %s21, %s22
    %p33 = scmp.eq.s32.totalorder %s13, 0
    %p34 = por %p32, %p33
    %p35 = scmp.ne.s32.totalorder %s21, %s22
    %p36 = scmp.eq.s32.totalorder %s14, 1
    %p37 = por %p35, %p36
    %p39 = scmp.ne.s32.totalorder %s22, %s38
    %p40 = scmp.eq.s32.totalorder %s14, 0
    %p41 = por %p39, %p40
    %s43 = sadd.s32 %s42, 1
    %p46 = scmp.eq.s32.totalorder %s8, 1
    %p47 = scmp.ne.s32.totalorder %s42, %s44
    %p48 = scmp.eq.s32.totalorder %s8, 0
    %p49 = por %p47, %p48
    %p50 = scmp.ne.s32.totalorder %s42, %s44
    %p51 = scmp.eq.s32.totalorder %s13, 1
    %p52 = por %p50, %p51
    %p53 = scmp.ne.s32.totalorder %s44, %s45
    %p54 = scmp.eq.s32.totalorder %s13, 0
    %p55 = por %p53, %p54
    %p56 = scmp.ne.s32.totalorder %s44, %s45
    %p57 = scmp.eq.s32.totalorder %s14, 1
    %p58 = por %p56, %p57
    %p60 = scmp.ne.s32.totalorder %s45, %s59
    %p61 = scmp.eq.s32.totalorder %s14, 0
    %p62 = por %p60, %p61
    %s63 = ssub.s32 %s8, %s15
    %p64 = scmp.eq.s32.totalorder %s63, 0
    %s66 = sadd.s32 %s65, 1
    %s67 = scalar_select %p64, %s65, %s66
    %p70 = pneg %p64
    %p71 = scmp.eq.s32.totalorder %s8, 1
    %p72 = por %p70, %p71
    %p73 = scmp.ne.s32.totalorder %s65, %s68
    %p74 = scmp.eq.s32.totalorder %s8, 0
    %p75 = por %p73, %p74
    %p76 = scmp.ne.s32.totalorder %s65, %s68
    %p77 = scmp.eq.s32.totalorder %s13, 1
    %p78 = por %p76, %p77
    %p79 = scmp.ne.s32.totalorder %s68, %s69
    %p80 = scmp.eq.s32.totalorder %s13, 0
    %p81 = por %p79, %p80
    %p82 = scmp.ne.s32.totalorder %s68, %s69
    %p83 = scmp.eq.s32.totalorder %s14, 1
    %p84 = por %p82, %p83
    %p86 = scmp.ne.s32.totalorder %s69, %s85
    %p87 = scmp.eq.s32.totalorder %s14, 0
    %p88 = por %p86, %p87
    %p89 = scmp.le.s32.totalorder 1, %s8
    %p90 = scmp.lt.s32.totalorder %s8, 3
    %p91 = pnand %p89, %p90
    %p92 = pneg %p91
    // Predicated region
    $region9: #{down_forward.6} parent=5 // pred_check
      _
    $region10: #{down_forward.6} parent=5 // pred_check_branch
      %94 = sbr.rel (%p91) target = $region12
    $region11: #{down_forward.6} parent=5 // pred_region
      %s95 = ssub.s32 %s8, 1
      // Predicated region
      $region13: #{down_forward.6} parent=11 // pred_check
        %p96 = pneg %p55
      $region14: #{down_forward.6} parent=11 // pred_check_branch
        %98 = sbr.rel (%p96) target = $region16
      $region15: #{down_forward.6} parent=11 // pred_region
        _
      $region16: #{down_forward.6} parent=11 // pred_fallthru
        _
    $region12: #{down_forward.6} parent=5 // pred_fallthru
      _
    %p99 = scmp.lt.s32.totalorder %s8, 2
    // Predicated region
    $region17: #{down_forward.6} parent=5 // pred_check
      %p100 = pneg %p99
    $region18: #{down_forward.6} parent=5 // pred_check_branch
      %102 = sbr.rel (%p100) target = $region20
    $region19: #{down_forward.6} parent=5 // pred_region
      // Predicated region
      $region21: #{down_forward.6} parent=19 // pred_check
        %p103 = pneg %p28
      $region22: #{down_forward.6} parent=19 // pred_check_branch
        %105 = sbr.rel (%p103) target = $region24
      $region23: #{down_forward.6} parent=19 // pred_region
        %s106 = smul.u32 8, %s8
        %p107 = scmp.lt.s32.totalorder %s106, 15
        %s108 = scalar_select %p107, %s106, 15
        %s109 = smul.addr %s108, 4
        %s110 = scalar_lea.vmem %s0, %s109
        %s111 = smul.u32 8, %s8
      $region24: #{down_forward.6} parent=19 // pred_fallthru
        _
    $region20: #{down_forward.6} parent=5 // pred_fallthru
      _
    %p112 = scmp.le.s32.totalorder 1, %s8
    %p113 = scmp.lt.s32.totalorder %s8, 3
    %p114 = pnand %p112, %p113
    %p115 = pneg %p114
    // Predicated region
    $region25: #{down_forward.6} parent=5 // pred_check
      _
    $region26: #{down_forward.6} parent=5 // pred_check_branch
      %117 = sbr.rel (%p114) target = $region28
    $region27: #{down_forward.6} parent=5 // pred_region
      %s118 = ssub.s32 %s8, 1
      %s119 = smul.u32 8, %s13
      %p120 = scmp.lt.s32.totalorder %s119, 15
      %s121 = scalar_select %p120, %s119, 15
      %s122 = smul.addr %s121, 4
      %s123 = scalar_lea.vmem %s0, %s122
      %p124 = pneg %p34
      %p125 = pneg %p31
      %p126 = pneg %p55
      %p127 = pneg %p52
      %p128 = pneg %p81
      %p129 = pneg %p78
      %p130 = scmp.lt.s32.totalorder %s13, 1
      %s131 = scalar_select %p130, %s13, 1
      %s132 = smul.addr %s131, 2
      %s133 = scalar_lea.vmem %s2, %s132
      %s134 = smul.u32 8, %s13
      %p135 = scmp.lt.s32.totalorder %s134, 15
      %s136 = scalar_select %p135, %s134, 15
      %s137 = smul.addr %s136, 4
      %s138 = scalar_lea.vmem %s0, %s137
      %s139 = smul.u32 8, %s13
      %p140 = scmp.lt.s32.totalorder %s13, 1
      %s141 = scalar_select %p140, %s13, 1
      %s142 = smul.addr %s141, 2
      %s143 = scalar_lea.vmem %s2, %s142
      %v145 = vld [vmem:[%s138] sm:$0xf]
      %v146 = vld [vmem:[%s138 + $0x4] sm:$0xf]
      %v147 = vld [vmem:[%s138 + $0x8] sm:$0xf]
      %v148 = vld [vmem:[%s138 + $0xc] sm:$0xf]
      %v149 = vld [vmem:[%s138 + $0x10] sm:$0xf]
      %v150 = vld [vmem:[%s138 + $0x14] sm:$0xf]
      %v151 = vld [vmem:[%s138 + $0x18] sm:$0xf]
      %v152 = vld [vmem:[%s138 + $0x1c] sm:$0xf]
      %v153 = vld [vmem:[%s1] sm:$0xf]
      %v154 = vld [vmem:[%s1 + $0x4] sm:$0xf]
      %v155 = vld [vmem:[%s1 + $0x8] sm:$0xf]
      %v156 = vld [vmem:[%s1 + $0xc] sm:$0xf]
      %v157 = vld [vmem:[%s1 + $0x10] sm:$0xf]
      %v158 = vld [vmem:[%s1 + $0x14] sm:$0xf]
      %v159 = vld [vmem:[%s1 + $0x18] sm:$0xf]
      %v160 = vld [vmem:[%s1 + $0x1c] sm:$0xf]
      %v161 = vld [vmem:[%s1 + $0x20] sm:$0xf]
      %v170 = vunpack.c.l.b16 %v145
      %v171 = vunpack.c.l.b16 %v146
      %v172 = vunpack.c.l.b16 %v147
      %v173 = vunpack.c.l.b16 %v148
      %v174 = vunpack.c.l.b16 %v149
      %v175 = vunpack.c.l.b16 %v150
      %v176 = vunpack.c.l.b16 %v151
      %v177 = vunpack.c.l.b16 %v152
      %v178 = vpack.c.b16 %v171, %v170
      %v179 = vpack.c.b16 %v173, %v172
      %v180 = vpack.c.b16 %v175, %v174
      %v181 = vpack.c.b16 %v177, %v176
      %v191 = vunpack.c.l.b16 %v153
      %v192 = vunpack.c.l.b16 %v154
      %v193 = vunpack.c.l.b16 %v155
      %v194 = vunpack.c.l.b16 %v156
      %v195 = vunpack.c.l.b16 %v157
      %v196 = vunpack.c.l.b16 %v158
      %v197 = vunpack.c.l.b16 %v159
      %v198 = vunpack.c.l.b16 %v160
      %v199 = vunpack.c.l.b16 %v161
      %v200 = vpack.c.b16 %v192, %v191
      %v201 = vpack.c.b16 %v194, %v193
      %v202 = vpack.c.b16 %v196, %v195
      %v203 = vpack.c.b16 %v198, %v197
      %v204 = vpack.c.b16 %v199, %v199
      %vm209 = vcmask 588800
      %v211 = vsel %vm209, %v178, 0
      %v214 = vsel %vm209, %v179, 0
      %v217 = vsel %vm209, %v180, 0
      %v220 = vsel %vm209, %v181, 0
      %vm222 = vcmask 1043456
      %v224 = vsel %vm222, %v204, 0
      %226 = vmatprep.subr.bf16.mxu0 0
      %227 = vmatpush1.bf16.msra.mxu0 0
      %228 = vmatprep.subr.bf16.mxu0 0
      %229 = vmatpush1.bf16.msra.mxu0 0
      %230 = vmatprep.subr.bf16.mxu0 0
      %231 = vmatpush1.bf16.msra.mxu0 0
      %232 = vmatprep.subr.bf16.mxu0 0
      %233 = vmatpush1.bf16.msra.mxu0 %v224
      %234 = vmatprep.subr.bf16.mxu0 0
      %235 = vmatpush1.bf16.msra.mxu0 %v203
      %236 = vmatprep.subr.bf16.mxu0 0
      %237 = vmatpush1.bf16.msra.mxu0 %v202
      %238 = vmatprep.subr.bf16.mxu0 0
      %239 = vmatpush1.bf16.msra.mxu0 %v201
      %240 = vmatprep.subr.bf16.mxu0 0
      %241 = vmatpush1.bf16.msra.mxu0 %v200
      %242 = vmatprep.subr.bf16.mxu0 0
      %243 = vmatpush2.bf16.msra.mxu0 0
      %244 = vmatprep.subr.bf16.mxu0 0
      %245 = vmatpush2.bf16.msra.mxu0 0
      %246 = vmatprep.subr.bf16.mxu0 0
      %247 = vmatpush2.bf16.msra.mxu0 0
      %248 = vmatprep.subr.bf16.mxu0 0
      %249 = vmatpush2.bf16.msra.mxu0 0
      %250 = vmatprep.subr.bf16.mxu0 0
      %251 = vmatpush2.bf16.msra.mxu0 0
      %252 = vmatprep.subr.bf16.mxu0 0
      %253 = vmatpush2.bf16.msra.mxu0 0
      %254 = vmatprep.subr.bf16.mxu0 0
      %255 = vmatpush2.bf16.msra.mxu0 0
      %256 = vmatprep.subr.bf16.mxu0 0
      %257 = vmatpush2.bf16.msra.mxu0 0
      %258 = vmatprep.mubr.bf16.mxu0 0
      %259 = vmatmul.mubr.bf16.gmra.mxu0 %v211
      %v260 = vpop.f32.mrf.mxu0
      %v261 = vadd.f32 0.0, %v260
      %v262 = vpop.f32.mrf.mxu0
      %v263 = vpop.f32.mrf.mxu0
      %v264 = vadd.f32 0.0, %v263
      %v265 = vpop.f32.mrf.mxu0
      %266 = vmatprep.mubr.bf16.mxu0 0
      %267 = vmatmul.mubr.bf16.gmra.mxu0 %v214
      %v268 = vpop.f32.mrf.mxu0
      %v269 = vadd.f32 0.0, %v268
      %v270 = vpop.f32.mrf.mxu0
      %v271 = vpop.f32.mrf.mxu0
      %v272 = vadd.f32 0.0, %v271
      %v273 = vpop.f32.mrf.mxu0
      %274 = vmatprep.mubr.bf16.mxu0 0
      %275 = vmatmul.mubr.bf16.gmra.mxu0 %v217
      %v276 = vpop.f32.mrf.mxu0
      %v277 = vadd.f32 0.0, %v276
      %v278 = vpop.f32.mrf.mxu0
      %v279 = vpop.f32.mrf.mxu0
      %v280 = vadd.f32 0.0, %v279
      %v281 = vpop.f32.mrf.mxu0
      %282 = vmatprep.mubr.bf16.mxu0 0
      %283 = vmatmul.mubr.bf16.gmra.mxu0 %v220
      %v284 = vpop.f32.mrf.mxu0
      %v285 = vadd.f32 0.0, %v284
      %v286 = vpop.f32.mrf.mxu0
      %v287 = vpop.f32.mrf.mxu0
      %v288 = vadd.f32 0.0, %v287
      %v289 = vpop.f32.mrf.mxu0
      %290 = vdwg.mxu0
      %v291 = vadd.f32 %v261, %v264
      %v292 = vadd.f32 %v291, %v269
      %v293 = vadd.f32 %v292, %v272
      %v294 = vadd.f32 %v293, %v277
      %v295 = vadd.f32 %v294, %v280
      %v296 = vadd.f32 %v295, %v285
      %v297 = vadd.f32 %v296, %v288
      %v298 = vrot.slane %v297, 4
      %v299 = vadd.f32 %v297, %v298
      %v300 = vrot.slane %v299, 2
      %v301 = vadd.f32 %v299, %v300
      %v302 = vrot.slane %v301, 1
      %v303 = vadd.f32 %v301, %v302
      %v304 = vmul.f32 %v261, %v261
      %v305 = vmul.f32 %v264, %v264
      %v306 = vmul.f32 %v269, %v269
      %v307 = vmul.f32 %v272, %v272
      %v308 = vmul.f32 %v277, %v277
      %v309 = vmul.f32 %v280, %v280
      %v310 = vmul.f32 %v285, %v285
      %v311 = vmul.f32 %v288, %v288
      %v312 = vadd.f32 %v304, %v305
      %v313 = vadd.f32 %v312, %v306
      %v314 = vadd.f32 %v313, %v307
      %v315 = vadd.f32 %v314, %v308
      %v316 = vadd.f32 %v315, %v309
      %v317 = vadd.f32 %v316, %v310
      %v318 = vadd.f32 %v317, %v311
      %v319 = vrot.slane %v318, 4
      %v320 = vadd.f32 %v318, %v319
      %v321 = vrot.slane %v320, 2
      %v322 = vadd.f32 %v320, %v321
      %v323 = vrot.slane %v322, 1
      %v324 = vadd.f32 %v322, %v323
      %vm325 = vcmask 1040384
      %v326 = vsel %vm325, %v303, %v324
      %327 = vst [vmem:[%s143] sm:$0x3] %v326
      %p328 = scmp.lt.s32.totalorder %s13, 1
      %s329 = scalar_select %p328, %s13, 1
      %s330 = smul.addr %s329, 2
      %s331 = scalar_lea.vmem %s2, %s330
      // Predicated region
      $region29: #{down_forward.6} parent=27 // pred_check
        %p332 = pneg %p78
      $region30: #{down_forward.6} parent=27 // pred_check_branch
        %334 = sbr.rel (%p332) target = $region32
      $region31: #{down_forward.6} parent=27 // pred_region
        _
      $region32: #{down_forward.6} parent=27 // pred_fallthru
        _
    $region28: #{down_forward.6} parent=5 // pred_fallthru
      _
    %p335 = scmp.le.s32.totalorder 2, %s8
    // Predicated region
    $region33: #{down_forward.6} parent=5 // pred_check
      %p336 = pneg %p335
    $region34: #{down_forward.6} parent=5 // pred_check_branch
      %338 = sbr.rel (%p336) target = $region36
    $region35: #{down_forward.6} parent=5 // pred_region
      %s339 = ssub.s32 %s8, 2
      // Predicated region
      $region37: #{down_forward.6} parent=35 // pred_check
        %p340 = pneg %p84
      $region38: #{down_forward.6} parent=35 // pred_check_branch
        %342 = sbr.rel (%p340) target = $region40
      $region39: #{down_forward.6} parent=35 // pred_region
        %p343 = scmp.lt.s32.totalorder %s14, 1
        %s344 = scalar_select %p343, %s14, 1
        %s345 = smul.addr %s344, 2
        %s346 = scalar_lea.vmem %s2, %s345
      $region40: #{down_forward.6} parent=35 // pred_fallthru
        _
    $region36: #{down_forward.6} parent=5 // pred_fallthru
      _
  $region6: #{down_forward.6} parent=0 // loop_footer
    %s12 = sadd.s32 1, %s8
  $region7: #{down_forward.6} parent=0 // loop_footer_branch
    %7 = sbr.rel target = $region3
  $region8: #{down_forward.6} parent=0 // loop_exit
    _

</llo_original>
